<compile_context>
chip_gen: v7x
topology: tpu7x:2x2x1
jax: 0.10.0
libtpu: 0.0.40
codegen_flags: <defaults>
</compile_context>

<pallas_src>
import functools

import jax
import jax.numpy as jnp
from jax.experimental import pallas as pl
from jax.experimental.pallas import tpu as pltpu

# ----- model config (from the module docstring) --------------------------------
NUM_OUTPUTS = 1   # output layer size (fused head below assumes O == 1)
INPUT_SIZE = 4    # number of input variables
SEQ_LEN = 10      # datapoints per experimental run
HIDDEN_SIZE = 4   # nodes in hidden state
NUM_LAYERS = 2
BATCH = 2

assert NUM_OUTPUTS == 1, "fused FC head in the kernel assumes num_outputs == 1"


def _vpu_matvec(x, w):
    """(B, K) @ (K, H) as K rank-1 VPU multiply-adds.

    For K = H = 4 this is a handful of co-issuable VALU ops instead of a
    serial MXU push + result-FIFO drain, which is what the latency-bound
    recurrence actually pays for.
    """
    acc = x[:, 0:1] * w[0:1, :]
    for k in range(1, w.shape[0]):
        acc = acc + x[:, k:k + 1] * w[k:k + 1, :]
    return acc


def rnn_net_kernel(x_ref, h0_ref, w_ih_ref, w_hh_ref, bias_ref, w_fc_ref,
                   b_fc_ref, out_ref, hN_ref,
                   *, input_size, hidden_size, num_layers, seq_len):
    """Multi-layer Elman RNN (tanh) + fused O=1 Linear head, fully in VMEM.

    x_ref    : (T, B, I)         time-major input; x_ref[t] is an aligned load
    h0_ref   : (L, B, H)
    w_ih_ref : (L, max(I,H), H)  pre-transposed (x @ W layout); layer 0 uses [:I]
    w_hh_ref : (L, H, H)         pre-transposed (h @ W layout)
    bias_ref : (L, 1, H)         b_ih + b_hh, pre-summed host-side
    w_fc_ref : (1, H)
    b_fc_ref : (1,)              SMEM scalar
    out_ref  : (B, T)            head output (one lane per timestep)
    hN_ref   : (L, B, H)
    """
    # Hoist all (tiny) weights into vregs once; rows are re-used as sublane
    # broadcasts inside the MACs.
    w_ih, w_hh, bias = [], [], []
    for l in range(num_layers):
        in_dim = input_size if l == 0 else hidden_size
        w_ih.append(w_ih_ref[l, :in_dim, :])      # (in_dim, H)
        w_hh.append(w_hh_ref[l])                  # (H, H)
        bias.append(bias_ref[l])                  # (1, H)
    w_fc = w_fc_ref[...]                          # (1, H)
    b_fc = b_fc_ref[0]

    hs = [h0_ref[l] for l in range(num_layers)]   # per-layer hidden, (B, H)

    # Wavefront schedule: iteration i runs layer l's step at time t = i - l, so
    # the serial dependence chain is T + L - 1 stages instead of T * L, and the
    # per-iteration layer steps are mutually independent (they only read the
    # previous iteration's hidden states).
    for i in range(seq_len + num_layers - 1):
        hs_prev = list(hs)                        # snapshot of last iteration
        for l in range(num_layers):
            t = i - l
            if not (0 <= t < seq_len):
                continue
            inp = x_ref[t] if l == 0 else hs_prev[l - 1]     # (B, in_dim)
            # Input-side MAC + bias does not depend on this layer's recurrence
            # -> pure filler work the scheduler can overlap.
            pre = _vpu_matvec(inp, w_ih[l]) + bias[l]        # (B, H)
            # Recurrent MAC on the critical path: 4 FMAs + EUP tanh, no MXU.
            hs[l] = jnp.tanh(pre + _vpu_matvec(hs_prev[l], w_hh[l]))
            if l == num_layers - 1:
                # Fused Linear head (O = 1): VPU multiply + lane reduce over H,
                # stored incrementally as one lane column (off critical path).
                head = jnp.sum(hs[l] * w_fc, axis=-1, keepdims=True) + b_fc
                out_ref[:, pl.ds(t, 1)] = head               # (B, 1)

    for l in range(num_layers):
        hN_ref[l] = hs[l]                          # final hidden per layer


@jax.jit
def rnn_net_forward(x, hidden, params):
    """Mirrors rnn_net.forward(x, hidden) -> (fc_out, hidden_final)."""
    B = x.shape[0]
    x = x.reshape(B, SEQ_LEN, INPUT_SIZE).astype(jnp.float32)     # x.view(...)
    # Time-major (T, B, I): each step reads x_ref[t] as an aligned tile load.
    x_tm = x.transpose(1, 0, 2)

    # Host-side weight prep (free relative to the kernel): transpose weights
    # into `x @ W` orientation and pre-sum the two RNN bias vectors.
    w_ih_t = jnp.swapaxes(params["w_ih"], 1, 2)        # (L, max(I,H), H)
    w_hh_t = jnp.swapaxes(params["w_hh"], 1, 2)        # (L, H, H)
    bias = params["b_ih"] + params["b_hh"]             # (L, 1, H)
    w_fc = params["w_fc"].astype(jnp.float32)          # (1, H)  (O == 1)
    b_fc = params["b_fc"].reshape(-1)                  # (1,) SMEM scalar

    kernel = functools.partial(
        rnn_net_kernel, input_size=INPUT_SIZE, hidden_size=HIDDEN_SIZE,
        num_layers=NUM_LAYERS, seq_len=SEQ_LEN)

    vmem = pl.BlockSpec(memory_space=pltpu.MemorySpace.VMEM)
    smem = pl.BlockSpec(memory_space=pltpu.MemorySpace.SMEM)
    out_bt, h_final = pl.pallas_call(
        kernel,
        out_shape=(jax.ShapeDtypeStruct((B, SEQ_LEN), jnp.float32),
                   jax.ShapeDtypeStruct((NUM_LAYERS, B, HIDDEN_SIZE),
                                        jnp.float32)),
        in_specs=[vmem, vmem, vmem, vmem, vmem, vmem, smem],
        out_specs=(vmem, vmem),
    )(x_tm, hidden, w_ih_t, w_hh_t, bias, w_fc, b_fc)

    # (B, T) -> (B, T, O=1) to match the PyTorch module's batch_first output.
    fc_out = out_bt[:, :, None]
    return fc_out, h_final


def init_params(key):
    """Deterministic init with PyTorch-style U(-1/sqrt(H), 1/sqrt(H)).

    Parameters are stored in PyTorch orientation; the wrapper pre-transposes /
    pre-sums before handing them to the kernel.
    """
    imax = max(INPUT_SIZE, HIDDEN_SIZE)
    bound = 1.0 / jnp.sqrt(jnp.float32(HIDDEN_SIZE))
    ks = jax.random.split(key, 6)
    u = lambda k, s: jax.random.uniform(k, s, jnp.float32, -bound, bound)
    # w_ih packed as (L, H, max(I, H)); layer 0 only uses first INPUT_SIZE cols.
    return {
        "w_ih": u(ks[0], (NUM_LAYERS, HIDDEN_SIZE, imax)),
        "w_hh": u(ks[1], (NUM_LAYERS, HIDDEN_SIZE, HIDDEN_SIZE)),
        "b_ih": u(ks[2], (NUM_LAYERS, 1, HIDDEN_SIZE)),
        "b_hh": u(ks[3], (NUM_LAYERS, 1, HIDDEN_SIZE)),
        "w_fc": u(ks[4], (NUM_OUTPUTS, HIDDEN_SIZE)),
        "b_fc": u(ks[5], (1, NUM_OUTPUTS)),
    }


def rnn_net_reference(x, hidden, params):
    """Pure-JAX reference (PyTorch nn.RNN + Linear semantics)."""
    B = x.shape[0]
    x = x.reshape(B, SEQ_LEN, INPUT_SIZE).astype(jnp.float32)
    layer_in = x
    h_finals = []
    for l in range(NUM_LAYERS):
        in_dim = INPUT_SIZE if l == 0 else HIDDEN_SIZE
        w_ih = params["w_ih"][l, :, :in_dim]
        w_hh = params["w_hh"][l]
        bias = params["b_ih"][l] + params["b_hh"][l]
        h = hidden[l]
        outs = []
        for t in range(SEQ_LEN):
            h = jnp.tanh(layer_in[:, t, :in_dim] @ w_ih.T + h @ w_hh.T + bias)
            outs.append(h)
        h_finals.append(h)
        layer_in = jnp.stack(outs, axis=1)
    fc = layer_in @ params["w_fc"].T + params["b_fc"]
    return fc, jnp.stack(h_finals, axis=0)


if __name__ == "__main__":
    key = jax.random.PRNGKey(0)
    k_param, k_x = jax.random.split(key)

    params = init_params(k_param)
    # Module's forward takes a flat-ish x and views it to (B, SEQ_LEN, INPUT_SIZE).
    x = jax.random.normal(k_x, (BATCH, SEQ_LEN * INPUT_SIZE), jnp.float32)
    # init_hidden(x): zeros of shape (num_layers, batch, hidden_size)
    hidden0 = jnp.zeros((NUM_LAYERS, BATCH, HIDDEN_SIZE), jnp.float32)

    fc_out, h_final = rnn_net_forward(x, hidden0, params)
    jax.block_until_ready((fc_out, h_final))

    ref_out, ref_h = rnn_net_reference(x, hidden0, params)
    assert fc_out.shape == (BATCH, SEQ_LEN, NUM_OUTPUTS)
    assert h_final.shape == (NUM_LAYERS, BATCH, HIDDEN_SIZE)
    assert jnp.allclose(fc_out, ref_out, atol=1e-5), "fc_out mismatch"
    assert jnp.allclose(h_final, ref_h, atol=1e-5), "hidden mismatch"

    print("KERNEL_OK")
</pallas_src>

<mosaic_0001>
module attributes {stable_mosaic.version = 11 : i64} {
  func.func @rnn_net_kernel(%arg0: memref<10x2x4xf32, #tpu.memory_space<vmem>>, %arg1: memref<2x2x4xf32, #tpu.memory_space<vmem>>, %arg2: memref<2x4x4xf32, #tpu.memory_space<vmem>>, %arg3: memref<2x4x4xf32, #tpu.memory_space<vmem>>, %arg4: memref<2x1x4xf32, #tpu.memory_space<vmem>>, %arg5: memref<1x4xf32, #tpu.memory_space<vmem>>, %arg6: memref<1xf32, #tpu.memory_space<smem>>, %arg7: memref<2x10xf32, #tpu.memory_space<vmem>>, %arg8: memref<2x2x4xf32, #tpu.memory_space<vmem>>) attributes {dimension_semantics = [], scalar_prefetch = 0 : i64, scratch_operands = 0 : i64, tpu.core_type = #tpu.core_type<tc>} {
    %c0 = arith.constant 0 : index
    %c0_0 = arith.constant 0 : index
    %c0_1 = arith.constant 0 : index
    %0 = vector.load %arg2[%c0, %c0_0, %c0_1] : memref<2x4x4xf32, #tpu.memory_space<vmem>>, vector<1x4x4xf32>
    %1 = vector.shape_cast %0 : vector<1x4x4xf32> to vector<4x4xf32>
    %c0_2 = arith.constant 0 : index
    %c0_3 = arith.constant 0 : index
    %c0_4 = arith.constant 0 : index
    %2 = vector.load %arg3[%c0_2, %c0_3, %c0_4] : memref<2x4x4xf32, #tpu.memory_space<vmem>>, vector<1x4x4xf32>
    %3 = vector.shape_cast %2 : vector<1x4x4xf32> to vector<4x4xf32>
    %c0_5 = arith.constant 0 : index
    %c0_6 = arith.constant 0 : index
    %c0_7 = arith.constant 0 : index
    %4 = vector.load %arg4[%c0_5, %c0_6, %c0_7] : memref<2x1x4xf32, #tpu.memory_space<vmem>>, vector<1x1x4xf32>
    %5 = vector.shape_cast %4 : vector<1x1x4xf32> to vector<1x4xf32>
    %c1 = arith.constant 1 : index
    %c0_8 = arith.constant 0 : index
    %c0_9 = arith.constant 0 : index
    %6 = vector.load %arg2[%c1, %c0_8, %c0_9] : memref<2x4x4xf32, #tpu.memory_space<vmem>>, vector<1x4x4xf32>
    %7 = vector.shape_cast %6 : vector<1x4x4xf32> to vector<4x4xf32>
    %c1_10 = arith.constant 1 : index
    %c0_11 = arith.constant 0 : index
    %c0_12 = arith.constant 0 : index
    %8 = vector.load %arg3[%c1_10, %c0_11, %c0_12] : memref<2x4x4xf32, #tpu.memory_space<vmem>>, vector<1x4x4xf32>
    %9 = vector.shape_cast %8 : vector<1x4x4xf32> to vector<4x4xf32>
    %c1_13 = arith.constant 1 : index
    %c0_14 = arith.constant 0 : index
    %c0_15 = arith.constant 0 : index
    %10 = vector.load %arg4[%c1_13, %c0_14, %c0_15] : memref<2x1x4xf32, #tpu.memory_space<vmem>>, vector<1x1x4xf32>
    %11 = vector.shape_cast %10 : vector<1x1x4xf32> to vector<1x4xf32>
    %c0_16 = arith.constant 0 : index
    %c0_17 = arith.constant 0 : index
    %12 = vector.load %arg5[%c0_16, %c0_17] : memref<1x4xf32, #tpu.memory_space<vmem>>, vector<1x4xf32>
    %c0_18 = arith.constant 0 : index
    %13 = memref.load %arg6[%c0_18] : memref<1xf32, #tpu.memory_space<smem>>
    %c0_19 = arith.constant 0 : index
    %c0_20 = arith.constant 0 : index
    %c0_21 = arith.constant 0 : index
    %14 = vector.load %arg1[%c0_19, %c0_20, %c0_21] : memref<2x2x4xf32, #tpu.memory_space<vmem>>, vector<1x2x4xf32>
    %15 = vector.shape_cast %14 : vector<1x2x4xf32> to vector<2x4xf32>
    %c1_22 = arith.constant 1 : index
    %c0_23 = arith.constant 0 : index
    %c0_24 = arith.constant 0 : index
    %16 = vector.load %arg1[%c1_22, %c0_23, %c0_24] : memref<2x2x4xf32, #tpu.memory_space<vmem>>, vector<1x2x4xf32>
    %17 = vector.shape_cast %16 : vector<1x2x4xf32> to vector<2x4xf32>
    %c0_25 = arith.constant 0 : index
    %c0_26 = arith.constant 0 : index
    %c0_27 = arith.constant 0 : index
    %18 = vector.load %arg0[%c0_25, %c0_26, %c0_27] : memref<10x2x4xf32, #tpu.memory_space<vmem>>, vector<1x2x4xf32>
    %19 = vector.shape_cast %18 : vector<1x2x4xf32> to vector<2x4xf32>
    %20 = vector.extract_strided_slice %19 {offsets = [0, 0], sizes = [2, 1], strides = [1, 1]} : vector<2x4xf32> to vector<2x1xf32>
    %21 = vector.extract_strided_slice %1 {offsets = [0, 0], sizes = [1, 4], strides = [1, 1]} : vector<4x4xf32> to vector<1x4xf32>
    %22 = vector.broadcast %20 : vector<2x1xf32> to vector<2x4xf32>
    %23 = vector.broadcast %21 : vector<1x4xf32> to vector<2x4xf32>
    %24 = arith.mulf %22, %23 : vector<2x4xf32>
    %25 = vector.extract_strided_slice %19 {offsets = [0, 1], sizes = [2, 1], strides = [1, 1]} : vector<2x4xf32> to vector<2x1xf32>
    %26 = vector.extract_strided_slice %1 {offsets = [1, 0], sizes = [1, 4], strides = [1, 1]} : vector<4x4xf32> to vector<1x4xf32>
    %27 = vector.broadcast %25 : vector<2x1xf32> to vector<2x4xf32>
    %28 = vector.broadcast %26 : vector<1x4xf32> to vector<2x4xf32>
    %29 = arith.mulf %27, %28 : vector<2x4xf32>
    %30 = arith.addf %24, %29 : vector<2x4xf32>
    %31 = vector.extract_strided_slice %19 {offsets = [0, 2], sizes = [2, 1], strides = [1, 1]} : vector<2x4xf32> to vector<2x1xf32>
    %32 = vector.extract_strided_slice %1 {offsets = [2, 0], sizes = [1, 4], strides = [1, 1]} : vector<4x4xf32> to vector<1x4xf32>
    %33 = vector.broadcast %31 : vector<2x1xf32> to vector<2x4xf32>
    %34 = vector.broadcast %32 : vector<1x4xf32> to vector<2x4xf32>
    %35 = arith.mulf %33, %34 : vector<2x4xf32>
    %36 = arith.addf %30, %35 : vector<2x4xf32>
    %37 = vector.extract_strided_slice %19 {offsets = [0, 3], sizes = [2, 1], strides = [1, 1]} : vector<2x4xf32> to vector<2x1xf32>
    %38 = vector.extract_strided_slice %1 {offsets = [3, 0], sizes = [1, 4], strides = [1, 1]} : vector<4x4xf32> to vector<1x4xf32>
    %39 = vector.broadcast %37 : vector<2x1xf32> to vector<2x4xf32>
    %40 = vector.broadcast %38 : vector<1x4xf32> to vector<2x4xf32>
    %41 = arith.mulf %39, %40 : vector<2x4xf32>
    %42 = arith.addf %36, %41 : vector<2x4xf32>
    %43 = vector.broadcast %5 : vector<1x4xf32> to vector<2x4xf32>
    %44 = arith.addf %42, %43 : vector<2x4xf32>
    %45 = vector.extract_strided_slice %15 {offsets = [0, 0], sizes = [2, 1], strides = [1, 1]} : vector<2x4xf32> to vector<2x1xf32>
    %46 = vector.extract_strided_slice %3 {offsets = [0, 0], sizes = [1, 4], strides = [1, 1]} : vector<4x4xf32> to vector<1x4xf32>
    %47 = vector.broadcast %45 : vector<2x1xf32> to vector<2x4xf32>
    %48 = vector.broadcast %46 : vector<1x4xf32> to vector<2x4xf32>
    %49 = arith.mulf %47, %48 : vector<2x4xf32>
    %50 = vector.extract_strided_slice %15 {offsets = [0, 1], sizes = [2, 1], strides = [1, 1]} : vector<2x4xf32> to vector<2x1xf32>
    %51 = vector.extract_strided_slice %3 {offsets = [1, 0], sizes = [1, 4], strides = [1, 1]} : vector<4x4xf32> to vector<1x4xf32>
    %52 = vector.broadcast %50 : vector<2x1xf32> to vector<2x4xf32>
    %53 = vector.broadcast %51 : vector<1x4xf32> to vector<2x4xf32>
    %54 = arith.mulf %52, %53 : vector<2x4xf32>
    %55 = arith.addf %49, %54 : vector<2x4xf32>
    %56 = vector.extract_strided_slice %15 {offsets = [0, 2], sizes = [2, 1], strides = [1, 1]} : vector<2x4xf32> to vector<2x1xf32>
    %57 = vector.extract_strided_slice %3 {offsets = [2, 0], sizes = [1, 4], strides = [1, 1]} : vector<4x4xf32> to vector<1x4xf32>
    %58 = vector.broadcast %56 : vector<2x1xf32> to vector<2x4xf32>
    %59 = vector.broadcast %57 : vector<1x4xf32> to vector<2x4xf32>
    %60 = arith.mulf %58, %59 : vector<2x4xf32>
    %61 = arith.addf %55, %60 : vector<2x4xf32>
    %62 = vector.extract_strided_slice %15 {offsets = [0, 3], sizes = [2, 1], strides = [1, 1]} : vector<2x4xf32> to vector<2x1xf32>
    %63 = vector.extract_strided_slice %3 {offsets = [3, 0], sizes = [1, 4], strides = [1, 1]} : vector<4x4xf32> to vector<1x4xf32>
    %64 = vector.broadcast %62 : vector<2x1xf32> to vector<2x4xf32>
    %65 = vector.broadcast %63 : vector<1x4xf32> to vector<2x4xf32>
    %66 = arith.mulf %64, %65 : vector<2x4xf32>
    %67 = arith.addf %61, %66 : vector<2x4xf32>
    %68 = arith.addf %44, %67 : vector<2x4xf32>
    %69 = math.tanh %68 : vector<2x4xf32>
    %c1_28 = arith.constant 1 : index
    %c0_29 = arith.constant 0 : index
    %c0_30 = arith.constant 0 : index
    %70 = vector.load %arg0[%c1_28, %c0_29, %c0_30] : memref<10x2x4xf32, #tpu.memory_space<vmem>>, vector<1x2x4xf32>
    %71 = vector.shape_cast %70 : vector<1x2x4xf32> to vector<2x4xf32>
    %72 = vector.extract_strided_slice %71 {offsets = [0, 0], sizes = [2, 1], strides = [1, 1]} : vector<2x4xf32> to vector<2x1xf32>
    %73 = vector.extract_strided_slice %1 {offsets = [0, 0], sizes = [1, 4], strides = [1, 1]} : vector<4x4xf32> to vector<1x4xf32>
    %74 = vector.broadcast %72 : vector<2x1xf32> to vector<2x4xf32>
    %75 = vector.broadcast %73 : vector<1x4xf32> to vector<2x4xf32>
    %76 = arith.mulf %74, %75 : vector<2x4xf32>
    %77 = vector.extract_strided_slice %71 {offsets = [0, 1], sizes = [2, 1], strides = [1, 1]} : vector<2x4xf32> to vector<2x1xf32>
    %78 = vector.extract_strided_slice %1 {offsets = [1, 0], sizes = [1, 4], strides = [1, 1]} : vector<4x4xf32> to vector<1x4xf32>
    %79 = vector.broadcast %77 : vector<2x1xf32> to vector<2x4xf32>
    %80 = vector.broadcast %78 : vector<1x4xf32> to vector<2x4xf32>
    %81 = arith.mulf %79, %80 : vector<2x4xf32>
    %82 = arith.addf %76, %81 : vector<2x4xf32>
    %83 = vector.extract_strided_slice %71 {offsets = [0, 2], sizes = [2, 1], strides = [1, 1]} : vector<2x4xf32> to vector<2x1xf32>
    %84 = vector.extract_strided_slice %1 {offsets = [2, 0], sizes = [1, 4], strides = [1, 1]} : vector<4x4xf32> to vector<1x4xf32>
    %85 = vector.broadcast %83 : vector<2x1xf32> to vector<2x4xf32>
    %86 = vector.broadcast %84 : vector<1x4xf32> to vector<2x4xf32>
    %87 = arith.mulf %85, %86 : vector<2x4xf32>
    %88 = arith.addf %82, %87 : vector<2x4xf32>
    %89 = vector.extract_strided_slice %71 {offsets = [0, 3], sizes = [2, 1], strides = [1, 1]} : vector<2x4xf32> to vector<2x1xf32>
    %90 = vector.extract_strided_slice %1 {offsets = [3, 0], sizes = [1, 4], strides = [1, 1]} : vector<4x4xf32> to vector<1x4xf32>
    %91 = vector.broadcast %89 : vector<2x1xf32> to vector<2x4xf32>
    %92 = vector.broadcast %90 : vector<1x4xf32> to vector<2x4xf32>
    %93 = arith.mulf %91, %92 : vector<2x4xf32>
    %94 = arith.addf %88, %93 : vector<2x4xf32>
    %95 = vector.broadcast %5 : vector<1x4xf32> to vector<2x4xf32>
    %96 = arith.addf %94, %95 : vector<2x4xf32>
    %97 = vector.extract_strided_slice %69 {offsets = [0, 0], sizes = [2, 1], strides = [1, 1]} : vector<2x4xf32> to vector<2x1xf32>
    %98 = vector.extract_strided_slice %3 {offsets = [0, 0], sizes = [1, 4], strides = [1, 1]} : vector<4x4xf32> to vector<1x4xf32>
    %99 = vector.broadcast %97 : vector<2x1xf32> to vector<2x4xf32>
    %100 = vector.broadcast %98 : vector<1x4xf32> to vector<2x4xf32>
    %101 = arith.mulf %99, %100 : vector<2x4xf32>
    %102 = vector.extract_strided_slice %69 {offsets = [0, 1], sizes = [2, 1], strides = [1, 1]} : vector<2x4xf32> to vector<2x1xf32>
    %103 = vector.extract_strided_slice %3 {offsets = [1, 0], sizes = [1, 4], strides = [1, 1]} : vector<4x4xf32> to vector<1x4xf32>
    %104 = vector.broadcast %102 : vector<2x1xf32> to vector<2x4xf32>
    %105 = vector.broadcast %103 : vector<1x4xf32> to vector<2x4xf32>
    %106 = arith.mulf %104, %105 : vector<2x4xf32>
    %107 = arith.addf %101, %106 : vector<2x4xf32>
    %108 = vector.extract_strided_slice %69 {offsets = [0, 2], sizes = [2, 1], strides = [1, 1]} : vector<2x4xf32> to vector<2x1xf32>
    %109 = vector.extract_strided_slice %3 {offsets = [2, 0], sizes = [1, 4], strides = [1, 1]} : vector<4x4xf32> to vector<1x4xf32>
    %110 = vector.broadcast %108 : vector<2x1xf32> to vector<2x4xf32>
    %111 = vector.broadcast %109 : vector<1x4xf32> to vector<2x4xf32>
    %112 = arith.mulf %110, %111 : vector<2x4xf32>
    %113 = arith.addf %107, %112 : vector<2x4xf32>
    %114 = vector.extract_strided_slice %69 {offsets = [0, 3], sizes = [2, 1], strides = [1, 1]} : vector<2x4xf32> to vector<2x1xf32>
    %115 = vector.extract_strided_slice %3 {offsets = [3, 0], sizes = [1, 4], strides = [1, 1]} : vector<4x4xf32> to vector<1x4xf32>
    %116 = vector.broadcast %114 : vector<2x1xf32> to vector<2x4xf32>
    %117 = vector.broadcast %115 : vector<1x4xf32> to vector<2x4xf32>
    %118 = arith.mulf %116, %117 : vector<2x4xf32>
    %119 = arith.addf %113, %118 : vector<2x4xf32>
    %120 = arith.addf %96, %119 : vector<2x4xf32>
    %121 = math.tanh %120 : vector<2x4xf32>
    %122 = vector.extract_strided_slice %69 {offsets = [0, 0], sizes = [2, 1], strides = [1, 1]} : vector<2x4xf32> to vector<2x1xf32>
    %123 = vector.extract_strided_slice %7 {offsets = [0, 0], sizes = [1, 4], strides = [1, 1]} : vector<4x4xf32> to vector<1x4xf32>
    %124 = vector.broadcast %122 : vector<2x1xf32> to vector<2x4xf32>
    %125 = vector.broadcast %123 : vector<1x4xf32> to vector<2x4xf32>
    %126 = arith.mulf %124, %125 : vector<2x4xf32>
    %127 = vector.extract_strided_slice %69 {offsets = [0, 1], sizes = [2, 1], strides = [1, 1]} : vector<2x4xf32> to vector<2x1xf32>
    %128 = vector.extract_strided_slice %7 {offsets = [1, 0], sizes = [1, 4], strides = [1, 1]} : vector<4x4xf32> to vector<1x4xf32>
    %129 = vector.broadcast %127 : vector<2x1xf32> to vector<2x4xf32>
    %130 = vector.broadcast %128 : vector<1x4xf32> to vector<2x4xf32>
    %131 = arith.mulf %129, %130 : vector<2x4xf32>
    %132 = arith.addf %126, %131 : vector<2x4xf32>
    %133 = vector.extract_strided_slice %69 {offsets = [0, 2], sizes = [2, 1], strides = [1, 1]} : vector<2x4xf32> to vector<2x1xf32>
    %134 = vector.extract_strided_slice %7 {offsets = [2, 0], sizes = [1, 4], strides = [1, 1]} : vector<4x4xf32> to vector<1x4xf32>
    %135 = vector.broadcast %133 : vector<2x1xf32> to vector<2x4xf32>
    %136 = vector.broadcast %134 : vector<1x4xf32> to vector<2x4xf32>
    %137 = arith.mulf %135, %136 : vector<2x4xf32>
    %138 = arith.addf %132, %137 : vector<2x4xf32>
    %139 = vector.extract_strided_slice %69 {offsets = [0, 3], sizes = [2, 1], strides = [1, 1]} : vector<2x4xf32> to vector<2x1xf32>
    %140 = vector.extract_strided_slice %7 {offsets = [3, 0], sizes = [1, 4], strides = [1, 1]} : vector<4x4xf32> to vector<1x4xf32>
    %141 = vector.broadcast %139 : vector<2x1xf32> to vector<2x4xf32>
    %142 = vector.broadcast %140 : vector<1x4xf32> to vector<2x4xf32>
    %143 = arith.mulf %141, %142 : vector<2x4xf32>
    %144 = arith.addf %138, %143 : vector<2x4xf32>
    %145 = vector.broadcast %11 : vector<1x4xf32> to vector<2x4xf32>
    %146 = arith.addf %144, %145 : vector<2x4xf32>
    %147 = vector.extract_strided_slice %17 {offsets = [0, 0], sizes = [2, 1], strides = [1, 1]} : vector<2x4xf32> to vector<2x1xf32>
    %148 = vector.extract_strided_slice %9 {offsets = [0, 0], sizes = [1, 4], strides = [1, 1]} : vector<4x4xf32> to vector<1x4xf32>
    %149 = vector.broadcast %147 : vector<2x1xf32> to vector<2x4xf32>
    %150 = vector.broadcast %148 : vector<1x4xf32> to vector<2x4xf32>
    %151 = arith.mulf %149, %150 : vector<2x4xf32>
    %152 = vector.extract_strided_slice %17 {offsets = [0, 1], sizes = [2, 1], strides = [1, 1]} : vector<2x4xf32> to vector<2x1xf32>
    %153 = vector.extract_strided_slice %9 {offsets = [1, 0], sizes = [1, 4], strides = [1, 1]} : vector<4x4xf32> to vector<1x4xf32>
    %154 = vector.broadcast %152 : vector<2x1xf32> to vector<2x4xf32>
    %155 = vector.broadcast %153 : vector<1x4xf32> to vector<2x4xf32>
    %156 = arith.mulf %154, %155 : vector<2x4xf32>
    %157 = arith.addf %151, %156 : vector<2x4xf32>
    %158 = vector.extract_strided_slice %17 {offsets = [0, 2], sizes = [2, 1], strides = [1, 1]} : vector<2x4xf32> to vector<2x1xf32>
    %159 = vector.extract_strided_slice %9 {offsets = [2, 0], sizes = [1, 4], strides = [1, 1]} : vector<4x4xf32> to vector<1x4xf32>
    %160 = vector.broadcast %158 : vector<2x1xf32> to vector<2x4xf32>
    %161 = vector.broadcast %159 : vector<1x4xf32> to vector<2x4xf32>
    %162 = arith.mulf %160, %161 : vector<2x4xf32>
    %163 = arith.addf %157, %162 : vector<2x4xf32>
    %164 = vector.extract_strided_slice %17 {offsets = [0, 3], sizes = [2, 1], strides = [1, 1]} : vector<2x4xf32> to vector<2x1xf32>
    %165 = vector.extract_strided_slice %9 {offsets = [3, 0], sizes = [1, 4], strides = [1, 1]} : vector<4x4xf32> to vector<1x4xf32>
    %166 = vector.broadcast %164 : vector<2x1xf32> to vector<2x4xf32>
    %167 = vector.broadcast %165 : vector<1x4xf32> to vector<2x4xf32>
    %168 = arith.mulf %166, %167 : vector<2x4xf32>
    %169 = arith.addf %163, %168 : vector<2x4xf32>
    %170 = arith.addf %146, %169 : vector<2x4xf32>
    %171 = math.tanh %170 : vector<2x4xf32>
    %172 = vector.broadcast %12 : vector<1x4xf32> to vector<2x4xf32>
    %173 = arith.mulf %171, %172 : vector<2x4xf32>
    %cst = arith.constant dense<0.000000e+00> : vector<2xf32>
    %174 = vector.multi_reduction <add>, %173, %cst [1] : vector<2x4xf32> to vector<2xf32>
    %175 = vector.shape_cast %174 : vector<2xf32> to vector<2x1xf32>
    %176 = vector.broadcast %13 : f32 to vector<2x1xf32>
    %177 = arith.addf %175, %176 : vector<2x1xf32>
    %c0_31 = arith.constant 0 : index
    %c0_32 = arith.constant 0 : index
    %178 = vector.load %arg7[%c0_31, %c0_32] : memref<2x10xf32, #tpu.memory_space<vmem>>, vector<2x1xf32>
    tpu.vector_store %arg7[%c0_31, %c0_32], %177 {strides = array<i32>} : memref<2x10xf32, #tpu.memory_space<vmem>>, vector<2x1xf32>,
    %c2 = arith.constant 2 : index
    %c0_33 = arith.constant 0 : index
    %c0_34 = arith.constant 0 : index
    %179 = vector.load %arg0[%c2, %c0_33, %c0_34] : memref<10x2x4xf32, #tpu.memory_space<vmem>>, vector<1x2x4xf32>
    %180 = vector.shape_cast %179 : vector<1x2x4xf32> to vector<2x4xf32>
    %181 = vector.extract_strided_slice %180 {offsets = [0, 0], sizes = [2, 1], strides = [1, 1]} : vector<2x4xf32> to vector<2x1xf32>
    %182 = vector.extract_strided_slice %1 {offsets = [0, 0], sizes = [1, 4], strides = [1, 1]} : vector<4x4xf32> to vector<1x4xf32>
    %183 = vector.broadcast %181 : vector<2x1xf32> to vector<2x4xf32>
    %184 = vector.broadcast %182 : vector<1x4xf32> to vector<2x4xf32>
    %185 = arith.mulf %183, %184 : vector<2x4xf32>
    %186 = vector.extract_strided_slice %180 {offsets = [0, 1], sizes = [2, 1], strides = [1, 1]} : vector<2x4xf32> to vector<2x1xf32>
    %187 = vector.extract_strided_slice %1 {offsets = [1, 0], sizes = [1, 4], strides = [1, 1]} : vector<4x4xf32> to vector<1x4xf32>
    %188 = vector.broadcast %186 : vector<2x1xf32> to vector<2x4xf32>
    %189 = vector.broadcast %187 : vector<1x4xf32> to vector<2x4xf32>
    %190 = arith.mulf %188, %189 : vector<2x4xf32>
    %191 = arith.addf %185, %190 : vector<2x4xf32>
    %192 = vector.extract_strided_slice %180 {offsets = [0, 2], sizes = [2, 1], strides = [1, 1]} : vector<2x4xf32> to vector<2x1xf32>
    %193 = vector.extract_strided_slice %1 {offsets = [2, 0], sizes = [1, 4], strides = [1, 1]} : vector<4x4xf32> to vector<1x4xf32>
    %194 = vector.broadcast %192 : vector<2x1xf32> to vector<2x4xf32>
    %195 = vector.broadcast %193 : vector<1x4xf32> to vector<2x4xf32>
    %196 = arith.mulf %194, %195 : vector<2x4xf32>
    %197 = arith.addf %191, %196 : vector<2x4xf32>
    %198 = vector.extract_strided_slice %180 {offsets = [0, 3], sizes = [2, 1], strides = [1, 1]} : vector<2x4xf32> to vector<2x1xf32>
    %199 = vector.extract_strided_slice %1 {offsets = [3, 0], sizes = [1, 4], strides = [1, 1]} : vector<4x4xf32> to vector<1x4xf32>
    %200 = vector.broadcast %198 : vector<2x1xf32> to vector<2x4xf32>
    %201 = vector.broadcast %199 : vector<1x4xf32> to vector<2x4xf32>
    %202 = arith.mulf %200, %201 : vector<2x4xf32>
    %203 = arith.addf %197, %202 : vector<2x4xf32>
    %204 = vector.broadcast %5 : vector<1x4xf32> to vector<2x4xf32>
    %205 = arith.addf %203, %204 : vector<2x4xf32>
    %206 = vector.extract_strided_slice %121 {offsets = [0, 0], sizes = [2, 1], strides = [1, 1]} : vector<2x4xf32> to vector<2x1xf32>
    %207 = vector.extract_strided_slice %3 {offsets = [0, 0], sizes = [1, 4], strides = [1, 1]} : vector<4x4xf32> to vector<1x4xf32>
    %208 = vector.broadcast %206 : vector<2x1xf32> to vector<2x4xf32>
    %209 = vector.broadcast %207 : vector<1x4xf32> to vector<2x4xf32>
    %210 = arith.mulf %208, %209 : vector<2x4xf32>
    %211 = vector.extract_strided_slice %121 {offsets = [0, 1], sizes = [2, 1], strides = [1, 1]} : vector<2x4xf32> to vector<2x1xf32>
    %212 = vector.extract_strided_slice %3 {offsets = [1, 0], sizes = [1, 4], strides = [1, 1]} : vector<4x4xf32> to vector<1x4xf32>
    %213 = vector.broadcast %211 : vector<2x1xf32> to vector<2x4xf32>
    %214 = vector.broadcast %212 : vector<1x4xf32> to vector<2x4xf32>
    %215 = arith.mulf %213, %214 : vector<2x4xf32>
    %216 = arith.addf %210, %215 : vector<2x4xf32>
    %217 = vector.extract_strided_slice %121 {offsets = [0, 2], sizes = [2, 1], strides = [1, 1]} : vector<2x4xf32> to vector<2x1xf32>
    %218 = vector.extract_strided_slice %3 {offsets = [2, 0], sizes = [1, 4], strides = [1, 1]} : vector<4x4xf32> to vector<1x4xf32>
    %219 = vector.broadcast %217 : vector<2x1xf32> to vector<2x4xf32>
    %220 = vector.broadcast %218 : vector<1x4xf32> to vector<2x4xf32>
    %221 = arith.mulf %219, %220 : vector<2x4xf32>
    %222 = arith.addf %216, %221 : vector<2x4xf32>
    %223 = vector.extract_strided_slice %121 {offsets = [0, 3], sizes = [2, 1], strides = [1, 1]} : vector<2x4xf32> to vector<2x1xf32>
    %224 = vector.extract_strided_slice %3 {offsets = [3, 0], sizes = [1, 4], strides = [1, 1]} : vector<4x4xf32> to vector<1x4xf32>
    %225 = vector.broadcast %223 : vector<2x1xf32> to vector<2x4xf32>
    %226 = vector.broadcast %224 : vector<1x4xf32> to vector<2x4xf32>
    %227 = arith.mulf %225, %226 : vector<2x4xf32>
    %228 = arith.addf %222, %227 : vector<2x4xf32>
    %229 = arith.addf %205, %228 : vector<2x4xf32>
    %230 = math.tanh %229 : vector<2x4xf32>
    %231 = vector.extract_strided_slice %121 {offsets = [0, 0], sizes = [2, 1], strides = [1, 1]} : vector<2x4xf32> to vector<2x1xf32>
    %232 = vector.extract_strided_slice %7 {offsets = [0, 0], sizes = [1, 4], strides = [1, 1]} : vector<4x4xf32> to vector<1x4xf32>
    %233 = vector.broadcast %231 : vector<2x1xf32> to vector<2x4xf32>
    %234 = vector.broadcast %232 : vector<1x4xf32> to vector<2x4xf32>
    %235 = arith.mulf %233, %234 : vector<2x4xf32>
    %236 = vector.extract_strided_slice %121 {offsets = [0, 1], sizes = [2, 1], strides = [1, 1]} : vector<2x4xf32> to vector<2x1xf32>
    %237 = vector.extract_strided_slice %7 {offsets = [1, 0], sizes = [1, 4], strides = [1, 1]} : vector<4x4xf32> to vector<1x4xf32>
    %238 = vector.broadcast %236 : vector<2x1xf32> to vector<2x4xf32>
    %239 = vector.broadcast %237 : vector<1x4xf32> to vector<2x4xf32>
    %240 = arith.mulf %238, %239 : vector<2x4xf32>
    %241 = arith.addf %235, %240 : vector<2x4xf32>
    %242 = vector.extract_strided_slice %121 {offsets = [0, 2], sizes = [2, 1], strides = [1, 1]} : vector<2x4xf32> to vector<2x1xf32>
    %243 = vector.extract_strided_slice %7 {offsets = [2, 0], sizes = [1, 4], strides = [1, 1]} : vector<4x4xf32> to vector<1x4xf32>
    %244 = vector.broadcast %242 : vector<2x1xf32> to vector<2x4xf32>
    %245 = vector.broadcast %243 : vector<1x4xf32> to vector<2x4xf32>
    %246 = arith.mulf %244, %245 : vector<2x4xf32>
    %247 = arith.addf %241, %246 : vector<2x4xf32>
    %248 = vector.extract_strided_slice %121 {offsets = [0, 3], sizes = [2, 1], strides = [1, 1]} : vector<2x4xf32> to vector<2x1xf32>
    %249 = vector.extract_strided_slice %7 {offsets = [3, 0], sizes = [1, 4], strides = [1, 1]} : vector<4x4xf32> to vector<1x4xf32>
    %250 = vector.broadcast %248 : vector<2x1xf32> to vector<2x4xf32>
    %251 = vector.broadcast %249 : vector<1x4xf32> to vector<2x4xf32>
    %252 = arith.mulf %250, %251 : vector<2x4xf32>
    %253 = arith.addf %247, %252 : vector<2x4xf32>
    %254 = vector.broadcast %11 : vector<1x4xf32> to vector<2x4xf32>
    %255 = arith.addf %253, %254 : vector<2x4xf32>
    %256 = vector.extract_strided_slice %171 {offsets = [0, 0], sizes = [2, 1], strides = [1, 1]} : vector<2x4xf32> to vector<2x1xf32>
    %257 = vector.extract_strided_slice %9 {offsets = [0, 0], sizes = [1, 4], strides = [1, 1]} : vector<4x4xf32> to vector<1x4xf32>
    %258 = vector.broadcast %256 : vector<2x1xf32> to vector<2x4xf32>
    %259 = vector.broadcast %257 : vector<1x4xf32> to vector<2x4xf32>
    %260 = arith.mulf %258, %259 : vector<2x4xf32>
    %261 = vector.extract_strided_slice %171 {offsets = [0, 1], sizes = [2, 1], strides = [1, 1]} : vector<2x4xf32> to vector<2x1xf32>
    %262 = vector.extract_strided_slice %9 {offsets = [1, 0], sizes = [1, 4], strides = [1, 1]} : vector<4x4xf32> to vector<1x4xf32>
    %263 = vector.broadcast %261 : vector<2x1xf32> to vector<2x4xf32>
    %264 = vector.broadcast %262 : vector<1x4xf32> to vector<2x4xf32>
    %265 = arith.mulf %263, %264 : vector<2x4xf32>
    %266 = arith.addf %260, %265 : vector<2x4xf32>
    %267 = vector.extract_strided_slice %171 {offsets = [0, 2], sizes = [2, 1], strides = [1, 1]} : vector<2x4xf32> to vector<2x1xf32>
    %268 = vector.extract_strided_slice %9 {offsets = [2, 0], sizes = [1, 4], strides = [1, 1]} : vector<4x4xf32> to vector<1x4xf32>
    %269 = vector.broadcast %267 : vector<2x1xf32> to vector<2x4xf32>
    %270 = vector.broadcast %268 : vector<1x4xf32> to vector<2x4xf32>
    %271 = arith.mulf %269, %270 : vector<2x4xf32>
    %272 = arith.addf %266, %271 : vector<2x4xf32>
    %273 = vector.extract_strided_slice %171 {offsets = [0, 3], sizes = [2, 1], strides = [1, 1]} : vector<2x4xf32> to vector<2x1xf32>
    %274 = vector.extract_strided_slice %9 {offsets = [3, 0], sizes = [1, 4], strides = [1, 1]} : vector<4x4xf32> to vector<1x4xf32>
    %275 = vector.broadcast %273 : vector<2x1xf32> to vector<2x4xf32>
    %276 = vector.broadcast %274 : vector<1x4xf32> to vector<2x4xf32>
    %277 = arith.mulf %275, %276 : vector<2x4xf32>
    %278 = arith.addf %272, %277 : vector<2x4xf32>
    %279 = arith.addf %255, %278 : vector<2x4xf32>
    %280 = math.tanh %279 : vector<2x4xf32>
    %281 = vector.broadcast %12 : vector<1x4xf32> to vector<2x4xf32>
    %282 = arith.mulf %280, %281 : vector<2x4xf32>
    %cst_35 = arith.constant dense<0.000000e+00> : vector<2xf32>
    %283 = vector.multi_reduction <add>, %282, %cst_35 [1] : vector<2x4xf32> to vector<2xf32>
    %284 = vector.shape_cast %283 : vector<2xf32> to vector<2x1xf32>
    %285 = vector.broadcast %13 : f32 to vector<2x1xf32>
    %286 = arith.addf %284, %285 : vector<2x1xf32>
    %c0_36 = arith.constant 0 : index
    %c1_37 = arith.constant 1 : index
    %287 = vector.load %arg7[%c0_36, %c1_37] : memref<2x10xf32, #tpu.memory_space<vmem>>, vector<2x1xf32>
    tpu.vector_store %arg7[%c0_36, %c1_37], %286 {strides = array<i32>} : memref<2x10xf32, #tpu.memory_space<vmem>>, vector<2x1xf32>,
    %c3 = arith.constant 3 : index
    %c0_38 = arith.constant 0 : index
    %c0_39 = arith.constant 0 : index
    %288 = vector.load %arg0[%c3, %c0_38, %c0_39] : memref<10x2x4xf32, #tpu.memory_space<vmem>>, vector<1x2x4xf32>
    %289 = vector.shape_cast %288 : vector<1x2x4xf32> to vector<2x4xf32>
    %290 = vector.extract_strided_slice %289 {offsets = [0, 0], sizes = [2, 1], strides = [1, 1]} : vector<2x4xf32> to vector<2x1xf32>
    %291 = vector.extract_strided_slice %1 {offsets = [0, 0], sizes = [1, 4], strides = [1, 1]} : vector<4x4xf32> to vector<1x4xf32>
    %292 = vector.broadcast %290 : vector<2x1xf32> to vector<2x4xf32>
    %293 = vector.broadcast %291 : vector<1x4xf32> to vector<2x4xf32>
    %294 = arith.mulf %292, %293 : vector<2x4xf32>
    %295 = vector.extract_strided_slice %289 {offsets = [0, 1], sizes = [2, 1], strides = [1, 1]} : vector<2x4xf32> to vector<2x1xf32>
    %296 = vector.extract_strided_slice %1 {offsets = [1, 0], sizes = [1, 4], strides = [1, 1]} : vector<4x4xf32> to vector<1x4xf32>
    %297 = vector.broadcast %295 : vector<2x1xf32> to vector<2x4xf32>
    %298 = vector.broadcast %296 : vector<1x4xf32> to vector<2x4xf32>
    %299 = arith.mulf %297, %298 : vector<2x4xf32>
    %300 = arith.addf %294, %299 : vector<2x4xf32>
    %301 = vector.extract_strided_slice %289 {offsets = [0, 2], sizes = [2, 1], strides = [1, 1]} : vector<2x4xf32> to vector<2x1xf32>
    %302 = vector.extract_strided_slice %1 {offsets = [2, 0], sizes = [1, 4], strides = [1, 1]} : vector<4x4xf32> to vector<1x4xf32>
    %303 = vector.broadcast %301 : vector<2x1xf32> to vector<2x4xf32>
    %304 = vector.broadcast %302 : vector<1x4xf32> to vector<2x4xf32>
    %305 = arith.mulf %303, %304 : vector<2x4xf32>
    %306 = arith.addf %300, %305 : vector<2x4xf32>
    %307 = vector.extract_strided_slice %289 {offsets = [0, 3], sizes = [2, 1], strides = [1, 1]} : vector<2x4xf32> to vector<2x1xf32>
    %308 = vector.extract_strided_slice %1 {offsets = [3, 0], sizes = [1, 4], strides = [1, 1]} : vector<4x4xf32> to vector<1x4xf32>
    %309 = vector.broadcast %307 : vector<2x1xf32> to vector<2x4xf32>
    %310 = vector.broadcast %308 : vector<1x4xf32> to vector<2x4xf32>
    %311 = arith.mulf %309, %310 : vector<2x4xf32>
    %312 = arith.addf %306, %311 : vector<2x4xf32>
    %313 = vector.broadcast %5 : vector<1x4xf32> to vector<2x4xf32>
    %314 = arith.addf %312, %313 : vector<2x4xf32>
    %315 = vector.extract_strided_slice %230 {offsets = [0, 0], sizes = [2, 1], strides = [1, 1]} : vector<2x4xf32> to vector<2x1xf32>
    %316 = vector.extract_strided_slice %3 {offsets = [0, 0], sizes = [1, 4], strides = [1, 1]} : vector<4x4xf32> to vector<1x4xf32>
    %317 = vector.broadcast %315 : vector<2x1xf32> to vector<2x4xf32>
    %318 = vector.broadcast %316 : vector<1x4xf32> to vector<2x4xf32>
    %319 = arith.mulf %317, %318 : vector<2x4xf32>
    %320 = vector.extract_strided_slice %230 {offsets = [0, 1], sizes = [2, 1], strides = [1, 1]} : vector<2x4xf32> to vector<2x1xf32>
    %321 = vector.extract_strided_slice %3 {offsets = [1, 0], sizes = [1, 4], strides = [1, 1]} : vector<4x4xf32> to vector<1x4xf32>
    %322 = vector.broadcast %320 : vector<2x1xf32> to vector<2x4xf32>
    %323 = vector.broadcast %321 : vector<1x4xf32> to vector<2x4xf32>
    %324 = arith.mulf %322, %323 : vector<2x4xf32>
    %325 = arith.addf %319, %324 : vector<2x4xf32>
    %326 = vector.extract_strided_slice %230 {offsets = [0, 2], sizes = [2, 1], strides = [1, 1]} : vector<2x4xf32> to vector<2x1xf32>
    %327 = vector.extract_strided_slice %3 {offsets = [2, 0], sizes = [1, 4], strides = [1, 1]} : vector<4x4xf32> to vector<1x4xf32>
    %328 = vector.broadcast %326 : vector<2x1xf32> to vector<2x4xf32>
    %329 = vector.broadcast %327 : vector<1x4xf32> to vector<2x4xf32>
    %330 = arith.mulf %328, %329 : vector<2x4xf32>
    %331 = arith.addf %325, %330 : vector<2x4xf32>
    %332 = vector.extract_strided_slice %230 {offsets = [0, 3], sizes = [2, 1], strides = [1, 1]} : vector<2x4xf32> to vector<2x1xf32>
    %333 = vector.extract_strided_slice %3 {offsets = [3, 0], sizes = [1, 4], strides = [1, 1]} : vector<4x4xf32> to vector<1x4xf32>
    %334 = vector.broadcast %332 : vector<2x1xf32> to vector<2x4xf32>
    %335 = vector.broadcast %333 : vector<1x4xf32> to vector<2x4xf32>
    %336 = arith.mulf %334, %335 : vector<2x4xf32>
    %337 = arith.addf %331, %336 : vector<2x4xf32>
    %338 = arith.addf %314, %337 : vector<2x4xf32>
    %339 = math.tanh %338 : vector<2x4xf32>
    %340 = vector.extract_strided_slice %230 {offsets = [0, 0], sizes = [2, 1], strides = [1, 1]} : vector<2x4xf32> to vector<2x1xf32>
    %341 = vector.extract_strided_slice %7 {offsets = [0, 0], sizes = [1, 4], strides = [1, 1]} : vector<4x4xf32> to vector<1x4xf32>
    %342 = vector.broadcast %340 : vector<2x1xf32> to vector<2x4xf32>
    %343 = vector.broadcast %341 : vector<1x4xf32> to vector<2x4xf32>
    %344 = arith.mulf %342, %343 : vector<2x4xf32>
    %345 = vector.extract_strided_slice %230 {offsets = [0, 1], sizes = [2, 1], strides = [1, 1]} : vector<2x4xf32> to vector<2x1xf32>
    %346 = vector.extract_strided_slice %7 {offsets = [1, 0], sizes = [1, 4], strides = [1, 1]} : vector<4x4xf32> to vector<1x4xf32>
    %347 = vector.broadcast %345 : vector<2x1xf32> to vector<2x4xf32>
    %348 = vector.broadcast %346 : vector<1x4xf32> to vector<2x4xf32>
    %349 = arith.mulf %347, %348 : vector<2x4xf32>
    %350 = arith.addf %344, %349 : vector<2x4xf32>
    %351 = vector.extract_strided_slice %230 {offsets = [0, 2], sizes = [2, 1], strides = [1, 1]} : vector<2x4xf32> to vector<2x1xf32>
    %352 = vector.extract_strided_slice %7 {offsets = [2, 0], sizes = [1, 4], strides = [1, 1]} : vector<4x4xf32> to vector<1x4xf32>
    %353 = vector.broadcast %351 : vector<2x1xf32> to vector<2x4xf32>
    %354 = vector.broadcast %352 : vector<1x4xf32> to vector<2x4xf32>
    %355 = arith.mulf %353, %354 : vector<2x4xf32>
    %356 = arith.addf %350, %355 : vector<2x4xf32>
    %357 = vector.extract_strided_slice %230 {offsets = [0, 3], sizes = [2, 1], strides = [1, 1]} : vector<2x4xf32> to vector<2x1xf32>
    %358 = vector.extract_strided_slice %7 {offsets = [3, 0], sizes = [1, 4], strides = [1, 1]} : vector<4x4xf32> to vector<1x4xf32>
    %359 = vector.broadcast %357 : vector<2x1xf32> to vector<2x4xf32>
    %360 = vector.broadcast %358 : vector<1x4xf32> to vector<2x4xf32>
    %361 = arith.mulf %359, %360 : vector<2x4xf32>
    %362 = arith.addf %356, %361 : vector<2x4xf32>
    %363 = vector.broadcast %11 : vector<1x4xf32> to vector<2x4xf32>
    %364 = arith.addf %362, %363 : vector<2x4xf32>
    %365 = vector.extract_strided_slice %280 {offsets = [0, 0], sizes = [2, 1], strides = [1, 1]} : vector<2x4xf32> to vector<2x1xf32>
    %366 = vector.extract_strided_slice %9 {offsets = [0, 0], sizes = [1, 4], strides = [1, 1]} : vector<4x4xf32> to vector<1x4xf32>
    %367 = vector.broadcast %365 : vector<2x1xf32> to vector<2x4xf32>
    %368 = vector.broadcast %366 : vector<1x4xf32> to vector<2x4xf32>
    %369 = arith.mulf %367, %368 : vector<2x4xf32>
    %370 = vector.extract_strided_slice %280 {offsets = [0, 1], sizes = [2, 1], strides = [1, 1]} : vector<2x4xf32> to vector<2x1xf32>
    %371 = vector.extract_strided_slice %9 {offsets = [1, 0], sizes = [1, 4], strides = [1, 1]} : vector<4x4xf32> to vector<1x4xf32>
    %372 = vector.broadcast %370 : vector<2x1xf32> to vector<2x4xf32>
    %373 = vector.broadcast %371 : vector<1x4xf32> to vector<2x4xf32>
    %374 = arith.mulf %372, %373 : vector<2x4xf32>
    %375 = arith.addf %369, %374 : vector<2x4xf32>
    %376 = vector.extract_strided_slice %280 {offsets = [0, 2], sizes = [2, 1], strides = [1, 1]} : vector<2x4xf32> to vector<2x1xf32>
    %377 = vector.extract_strided_slice %9 {offsets = [2, 0], sizes = [1, 4], strides = [1, 1]} : vector<4x4xf32> to vector<1x4xf32>
    %378 = vector.broadcast %376 : vector<2x1xf32> to vector<2x4xf32>
    %379 = vector.broadcast %377 : vector<1x4xf32> to vector<2x4xf32>
    %380 = arith.mulf %378, %379 : vector<2x4xf32>
    %381 = arith.addf %375, %380 : vector<2x4xf32>
    %382 = vector.extract_strided_slice %280 {offsets = [0, 3], sizes = [2, 1], strides = [1, 1]} : vector<2x4xf32> to vector<2x1xf32>
    %383 = vector.extract_strided_slice %9 {offsets = [3, 0], sizes = [1, 4], strides = [1, 1]} : vector<4x4xf32> to vector<1x4xf32>
    %384 = vector.broadcast %382 : vector<2x1xf32> to vector<2x4xf32>
    %385 = vector.broadcast %383 : vector<1x4xf32> to vector<2x4xf32>
    %386 = arith.mulf %384, %385 : vector<2x4xf32>
    %387 = arith.addf %381, %386 : vector<2x4xf32>
    %388 = arith.addf %364, %387 : vector<2x4xf32>
    %389 = math.tanh %388 : vector<2x4xf32>
    %390 = vector.broadcast %12 : vector<1x4xf32> to vector<2x4xf32>
    %391 = arith.mulf %389, %390 : vector<2x4xf32>
    %cst_40 = arith.constant dense<0.000000e+00> : vector<2xf32>
    %392 = vector.multi_reduction <add>, %391, %cst_40 [1] : vector<2x4xf32> to vector<2xf32>
    %393 = vector.shape_cast %392 : vector<2xf32> to vector<2x1xf32>
    %394 = vector.broadcast %13 : f32 to vector<2x1xf32>
    %395 = arith.addf %393, %394 : vector<2x1xf32>
    %c0_41 = arith.constant 0 : index
    %c2_42 = arith.constant 2 : index
    %396 = vector.load %arg7[%c0_41, %c2_42] : memref<2x10xf32, #tpu.memory_space<vmem>>, vector<2x1xf32>
    tpu.vector_store %arg7[%c0_41, %c2_42], %395 {strides = array<i32>} : memref<2x10xf32, #tpu.memory_space<vmem>>, vector<2x1xf32>,
    %c4 = arith.constant 4 : index
    %c0_43 = arith.constant 0 : index
    %c0_44 = arith.constant 0 : index
    %397 = vector.load %arg0[%c4, %c0_43, %c0_44] : memref<10x2x4xf32, #tpu.memory_space<vmem>>, vector<1x2x4xf32>
    %398 = vector.shape_cast %397 : vector<1x2x4xf32> to vector<2x4xf32>
    %399 = vector.extract_strided_slice %398 {offsets = [0, 0], sizes = [2, 1], strides = [1, 1]} : vector<2x4xf32> to vector<2x1xf32>
    %400 = vector.extract_strided_slice %1 {offsets = [0, 0], sizes = [1, 4], strides = [1, 1]} : vector<4x4xf32> to vector<1x4xf32>
    %401 = vector.broadcast %399 : vector<2x1xf32> to vector<2x4xf32>
    %402 = vector.broadcast %400 : vector<1x4xf32> to vector<2x4xf32>
    %403 = arith.mulf %401, %402 : vector<2x4xf32>
    %404 = vector.extract_strided_slice %398 {offsets = [0, 1], sizes = [2, 1], strides = [1, 1]} : vector<2x4xf32> to vector<2x1xf32>
    %405 = vector.extract_strided_slice %1 {offsets = [1, 0], sizes = [1, 4], strides = [1, 1]} : vector<4x4xf32> to vector<1x4xf32>
    %406 = vector.broadcast %404 : vector<2x1xf32> to vector<2x4xf32>
    %407 = vector.broadcast %405 : vector<1x4xf32> to vector<2x4xf32>
    %408 = arith.mulf %406, %407 : vector<2x4xf32>
    %409 = arith.addf %403, %408 : vector<2x4xf32>
    %410 = vector.extract_strided_slice %398 {offsets = [0, 2], sizes = [2, 1], strides = [1, 1]} : vector<2x4xf32> to vector<2x1xf32>
    %411 = vector.extract_strided_slice %1 {offsets = [2, 0], sizes = [1, 4], strides = [1, 1]} : vector<4x4xf32> to vector<1x4xf32>
    %412 = vector.broadcast %410 : vector<2x1xf32> to vector<2x4xf32>
    %413 = vector.broadcast %411 : vector<1x4xf32> to vector<2x4xf32>
    %414 = arith.mulf %412, %413 : vector<2x4xf32>
    %415 = arith.addf %409, %414 : vector<2x4xf32>
    %416 = vector.extract_strided_slice %398 {offsets = [0, 3], sizes = [2, 1], strides = [1, 1]} : vector<2x4xf32> to vector<2x1xf32>
    %417 = vector.extract_strided_slice %1 {offsets = [3, 0], sizes = [1, 4], strides = [1, 1]} : vector<4x4xf32> to vector<1x4xf32>
    %418 = vector.broadcast %416 : vector<2x1xf32> to vector<2x4xf32>
    %419 = vector.broadcast %417 : vector<1x4xf32> to vector<2x4xf32>
    %420 = arith.mulf %418, %419 : vector<2x4xf32>
    %421 = arith.addf %415, %420 : vector<2x4xf32>
    %422 = vector.broadcast %5 : vector<1x4xf32> to vector<2x4xf32>
    %423 = arith.addf %421, %422 : vector<2x4xf32>
    %424 = vector.extract_strided_slice %339 {offsets = [0, 0], sizes = [2, 1], strides = [1, 1]} : vector<2x4xf32> to vector<2x1xf32>
    %425 = vector.extract_strided_slice %3 {offsets = [0, 0], sizes = [1, 4], strides = [1, 1]} : vector<4x4xf32> to vector<1x4xf32>
    %426 = vector.broadcast %424 : vector<2x1xf32> to vector<2x4xf32>
    %427 = vector.broadcast %425 : vector<1x4xf32> to vector<2x4xf32>
    %428 = arith.mulf %426, %427 : vector<2x4xf32>
    %429 = vector.extract_strided_slice %339 {offsets = [0, 1], sizes = [2, 1], strides = [1, 1]} : vector<2x4xf32> to vector<2x1xf32>
    %430 = vector.extract_strided_slice %3 {offsets = [1, 0], sizes = [1, 4], strides = [1, 1]} : vector<4x4xf32> to vector<1x4xf32>
    %431 = vector.broadcast %429 : vector<2x1xf32> to vector<2x4xf32>
    %432 = vector.broadcast %430 : vector<1x4xf32> to vector<2x4xf32>
    %433 = arith.mulf %431, %432 : vector<2x4xf32>
    %434 = arith.addf %428, %433 : vector<2x4xf32>
    %435 = vector.extract_strided_slice %339 {offsets = [0, 2], sizes = [2, 1], strides = [1, 1]} : vector<2x4xf32> to vector<2x1xf32>
    %436 = vector.extract_strided_slice %3 {offsets = [2, 0], sizes = [1, 4], strides = [1, 1]} : vector<4x4xf32> to vector<1x4xf32>
    %437 = vector.broadcast %435 : vector<2x1xf32> to vector<2x4xf32>
    %438 = vector.broadcast %436 : vector<1x4xf32> to vector<2x4xf32>
    %439 = arith.mulf %437, %438 : vector<2x4xf32>
    %440 = arith.addf %434, %439 : vector<2x4xf32>
    %441 = vector.extract_strided_slice %339 {offsets = [0, 3], sizes = [2, 1], strides = [1, 1]} : vector<2x4xf32> to vector<2x1xf32>
    %442 = vector.extract_strided_slice %3 {offsets = [3, 0], sizes = [1, 4], strides = [1, 1]} : vector<4x4xf32> to vector<1x4xf32>
    %443 = vector.broadcast %441 : vector<2x1xf32> to vector<2x4xf32>
    %444 = vector.broadcast %442 : vector<1x4xf32> to vector<2x4xf32>
    %445 = arith.mulf %443, %444 : vector<2x4xf32>
    %446 = arith.addf %440, %445 : vector<2x4xf32>
    %447 = arith.addf %423, %446 : vector<2x4xf32>
    %448 = math.tanh %447 : vector<2x4xf32>
    %449 = vector.extract_strided_slice %339 {offsets = [0, 0], sizes = [2, 1], strides = [1, 1]} : vector<2x4xf32> to vector<2x1xf32>
    %450 = vector.extract_strided_slice %7 {offsets = [0, 0], sizes = [1, 4], strides = [1, 1]} : vector<4x4xf32> to vector<1x4xf32>
    %451 = vector.broadcast %449 : vector<2x1xf32> to vector<2x4xf32>
    %452 = vector.broadcast %450 : vector<1x4xf32> to vector<2x4xf32>
    %453 = arith.mulf %451, %452 : vector<2x4xf32>
    %454 = vector.extract_strided_slice %339 {offsets = [0, 1], sizes = [2, 1], strides = [1, 1]} : vector<2x4xf32> to vector<2x1xf32>
    %455 = vector.extract_strided_slice %7 {offsets = [1, 0], sizes = [1, 4], strides = [1, 1]} : vector<4x4xf32> to vector<1x4xf32>
    %456 = vector.broadcast %454 : vector<2x1xf32> to vector<2x4xf32>
    %457 = vector.broadcast %455 : vector<1x4xf32> to vector<2x4xf32>
    %458 = arith.mulf %456, %457 : vector<2x4xf32>
    %459 = arith.addf %453, %458 : vector<2x4xf32>
    %460 = vector.extract_strided_slice %339 {offsets = [0, 2], sizes = [2, 1], strides = [1, 1]} : vector<2x4xf32> to vector<2x1xf32>
    %461 = vector.extract_strided_slice %7 {offsets = [2, 0], sizes = [1, 4], strides = [1, 1]} : vector<4x4xf32> to vector<1x4xf32>
    %462 = vector.broadcast %460 : vector<2x1xf32> to vector<2x4xf32>
    %463 = vector.broadcast %461 : vector<1x4xf32> to vector<2x4xf32>
    %464 = arith.mulf %462, %463 : vector<2x4xf32>
    %465 = arith.addf %459, %464 : vector<2x4xf32>
    %466 = vector.extract_strided_slice %339 {offsets = [0, 3], sizes = [2, 1], strides = [1, 1]} : vector<2x4xf32> to vector<2x1xf32>
    %467 = vector.extract_strided_slice %7 {offsets = [3, 0], sizes = [1, 4], strides = [1, 1]} : vector<4x4xf32> to vector<1x4xf32>
    %468 = vector.broadcast %466 : vector<2x1xf32> to vector<2x4xf32>
    %469 = vector.broadcast %467 : vector<1x4xf32> to vector<2x4xf32>
    %470 = arith.mulf %468, %469 : vector<2x4xf32>
    %471 = arith.addf %465, %470 : vector<2x4xf32>
    %472 = vector.broadcast %11 : vector<1x4xf32> to vector<2x4xf32>
    %473 = arith.addf %471, %472 : vector<2x4xf32>
    %474 = vector.extract_strided_slice %389 {offsets = [0, 0], sizes = [2, 1], strides = [1, 1]} : vector<2x4xf32> to vector<2x1xf32>
    %475 = vector.extract_strided_slice %9 {offsets = [0, 0], sizes = [1, 4], strides = [1, 1]} : vector<4x4xf32> to vector<1x4xf32>
    %476 = vector.broadcast %474 : vector<2x1xf32> to vector<2x4xf32>
    %477 = vector.broadcast %475 : vector<1x4xf32> to vector<2x4xf32>
    %478 = arith.mulf %476, %477 : vector<2x4xf32>
    %479 = vector.extract_strided_slice %389 {offsets = [0, 1], sizes = [2, 1], strides = [1, 1]} : vector<2x4xf32> to vector<2x1xf32>
    %480 = vector.extract_strided_slice %9 {offsets = [1, 0], sizes = [1, 4], strides = [1, 1]} : vector<4x4xf32> to vector<1x4xf32>
    %481 = vector.broadcast %479 : vector<2x1xf32> to vector<2x4xf32>
    %482 = vector.broadcast %480 : vector<1x4xf32> to vector<2x4xf32>
    %483 = arith.mulf %481, %482 : vector<2x4xf32>
    %484 = arith.addf %478, %483 : vector<2x4xf32>
    %485 = vector.extract_strided_slice %389 {offsets = [0, 2], sizes = [2, 1], strides = [1, 1]} : vector<2x4xf32> to vector<2x1xf32>
    %486 = vector.extract_strided_slice %9 {offsets = [2, 0], sizes = [1, 4], strides = [1, 1]} : vector<4x4xf32> to vector<1x4xf32>
    %487 = vector.broadcast %485 : vector<2x1xf32> to vector<2x4xf32>
    %488 = vector.broadcast %486 : vector<1x4xf32> to vector<2x4xf32>
    %489 = arith.mulf %487, %488 : vector<2x4xf32>
    %490 = arith.addf %484, %489 : vector<2x4xf32>
    %491 = vector.extract_strided_slice %389 {offsets = [0, 3], sizes = [2, 1], strides = [1, 1]} : vector<2x4xf32> to vector<2x1xf32>
    %492 = vector.extract_strided_slice %9 {offsets = [3, 0], sizes = [1, 4], strides = [1, 1]} : vector<4x4xf32> to vector<1x4xf32>
    %493 = vector.broadcast %491 : vector<2x1xf32> to vector<2x4xf32>
    %494 = vector.broadcast %492 : vector<1x4xf32> to vector<2x4xf32>
    %495 = arith.mulf %493, %494 : vector<2x4xf32>
    %496 = arith.addf %490, %495 : vector<2x4xf32>
    %497 = arith.addf %473, %496 : vector<2x4xf32>
    %498 = math.tanh %497 : vector<2x4xf32>
    %499 = vector.broadcast %12 : vector<1x4xf32> to vector<2x4xf32>
    %500 = arith.mulf %498, %499 : vector<2x4xf32>
    %cst_45 = arith.constant dense<0.000000e+00> : vector<2xf32>
    %501 = vector.multi_reduction <add>, %500, %cst_45 [1] : vector<2x4xf32> to vector<2xf32>
    %502 = vector.shape_cast %501 : vector<2xf32> to vector<2x1xf32>
    %503 = vector.broadcast %13 : f32 to vector<2x1xf32>
    %504 = arith.addf %502, %503 : vector<2x1xf32>
    %c0_46 = arith.constant 0 : index
    %c3_47 = arith.constant 3 : index
    %505 = vector.load %arg7[%c0_46, %c3_47] : memref<2x10xf32, #tpu.memory_space<vmem>>, vector<2x1xf32>
    tpu.vector_store %arg7[%c0_46, %c3_47], %504 {strides = array<i32>} : memref<2x10xf32, #tpu.memory_space<vmem>>, vector<2x1xf32>,
    %c5 = arith.constant 5 : index
    %c0_48 = arith.constant 0 : index
    %c0_49 = arith.constant 0 : index
    %506 = vector.load %arg0[%c5, %c0_48, %c0_49] : memref<10x2x4xf32, #tpu.memory_space<vmem>>, vector<1x2x4xf32>
    %507 = vector.shape_cast %506 : vector<1x2x4xf32> to vector<2x4xf32>
    %508 = vector.extract_strided_slice %507 {offsets = [0, 0], sizes = [2, 1], strides = [1, 1]} : vector<2x4xf32> to vector<2x1xf32>
    %509 = vector.extract_strided_slice %1 {offsets = [0, 0], sizes = [1, 4], strides = [1, 1]} : vector<4x4xf32> to vector<1x4xf32>
    %510 = vector.broadcast %508 : vector<2x1xf32> to vector<2x4xf32>
    %511 = vector.broadcast %509 : vector<1x4xf32> to vector<2x4xf32>
    %512 = arith.mulf %510, %511 : vector<2x4xf32>
    %513 = vector.extract_strided_slice %507 {offsets = [0, 1], sizes = [2, 1], strides = [1, 1]} : vector<2x4xf32> to vector<2x1xf32>
    %514 = vector.extract_strided_slice %1 {offsets = [1, 0], sizes = [1, 4], strides = [1, 1]} : vector<4x4xf32> to vector<1x4xf32>
    %515 = vector.broadcast %513 : vector<2x1xf32> to vector<2x4xf32>
    %516 = vector.broadcast %514 : vector<1x4xf32> to vector<2x4xf32>
    %517 = arith.mulf %515, %516 : vector<2x4xf32>
    %518 = arith.addf %512, %517 : vector<2x4xf32>
    %519 = vector.extract_strided_slice %507 {offsets = [0, 2], sizes = [2, 1], strides = [1, 1]} : vector<2x4xf32> to vector<2x1xf32>
    %520 = vector.extract_strided_slice %1 {offsets = [2, 0], sizes = [1, 4], strides = [1, 1]} : vector<4x4xf32> to vector<1x4xf32>
    %521 = vector.broadcast %519 : vector<2x1xf32> to vector<2x4xf32>
    %522 = vector.broadcast %520 : vector<1x4xf32> to vector<2x4xf32>
    %523 = arith.mulf %521, %522 : vector<2x4xf32>
    %524 = arith.addf %518, %523 : vector<2x4xf32>
    %525 = vector.extract_strided_slice %507 {offsets = [0, 3], sizes = [2, 1], strides = [1, 1]} : vector<2x4xf32> to vector<2x1xf32>
    %526 = vector.extract_strided_slice %1 {offsets = [3, 0], sizes = [1, 4], strides = [1, 1]} : vector<4x4xf32> to vector<1x4xf32>
    %527 = vector.broadcast %525 : vector<2x1xf32> to vector<2x4xf32>
    %528 = vector.broadcast %526 : vector<1x4xf32> to vector<2x4xf32>
    %529 = arith.mulf %527, %528 : vector<2x4xf32>
    %530 = arith.addf %524, %529 : vector<2x4xf32>
    %531 = vector.broadcast %5 : vector<1x4xf32> to vector<2x4xf32>
    %532 = arith.addf %530, %531 : vector<2x4xf32>
    %533 = vector.extract_strided_slice %448 {offsets = [0, 0], sizes = [2, 1], strides = [1, 1]} : vector<2x4xf32> to vector<2x1xf32>
    %534 = vector.extract_strided_slice %3 {offsets = [0, 0], sizes = [1, 4], strides = [1, 1]} : vector<4x4xf32> to vector<1x4xf32>
    %535 = vector.broadcast %533 : vector<2x1xf32> to vector<2x4xf32>
    %536 = vector.broadcast %534 : vector<1x4xf32> to vector<2x4xf32>
    %537 = arith.mulf %535, %536 : vector<2x4xf32>
    %538 = vector.extract_strided_slice %448 {offsets = [0, 1], sizes = [2, 1], strides = [1, 1]} : vector<2x4xf32> to vector<2x1xf32>
    %539 = vector.extract_strided_slice %3 {offsets = [1, 0], sizes = [1, 4], strides = [1, 1]} : vector<4x4xf32> to vector<1x4xf32>
    %540 = vector.broadcast %538 : vector<2x1xf32> to vector<2x4xf32>
    %541 = vector.broadcast %539 : vector<1x4xf32> to vector<2x4xf32>
    %542 = arith.mulf %540, %541 : vector<2x4xf32>
    %543 = arith.addf %537, %542 : vector<2x4xf32>
    %544 = vector.extract_strided_slice %448 {offsets = [0, 2], sizes = [2, 1], strides = [1, 1]} : vector<2x4xf32> to vector<2x1xf32>
    %545 = vector.extract_strided_slice %3 {offsets = [2, 0], sizes = [1, 4], strides = [1, 1]} : vector<4x4xf32> to vector<1x4xf32>
    %546 = vector.broadcast %544 : vector<2x1xf32> to vector<2x4xf32>
    %547 = vector.broadcast %545 : vector<1x4xf32> to vector<2x4xf32>
    %548 = arith.mulf %546, %547 : vector<2x4xf32>
    %549 = arith.addf %543, %548 : vector<2x4xf32>
    %550 = vector.extract_strided_slice %448 {offsets = [0, 3], sizes = [2, 1], strides = [1, 1]} : vector<2x4xf32> to vector<2x1xf32>
    %551 = vector.extract_strided_slice %3 {offsets = [3, 0], sizes = [1, 4], strides = [1, 1]} : vector<4x4xf32> to vector<1x4xf32>
    %552 = vector.broadcast %550 : vector<2x1xf32> to vector<2x4xf32>
    %553 = vector.broadcast %551 : vector<1x4xf32> to vector<2x4xf32>
    %554 = arith.mulf %552, %553 : vector<2x4xf32>
    %555 = arith.addf %549, %554 : vector<2x4xf32>
    %556 = arith.addf %532, %555 : vector<2x4xf32>
    %557 = math.tanh %556 : vector<2x4xf32>
    %558 = vector.extract_strided_slice %448 {offsets = [0, 0], sizes = [2, 1], strides = [1, 1]} : vector<2x4xf32> to vector<2x1xf32>
    %559 = vector.extract_strided_slice %7 {offsets = [0, 0], sizes = [1, 4], strides = [1, 1]} : vector<4x4xf32> to vector<1x4xf32>
    %560 = vector.broadcast %558 : vector<2x1xf32> to vector<2x4xf32>
    %561 = vector.broadcast %559 : vector<1x4xf32> to vector<2x4xf32>
    %562 = arith.mulf %560, %561 : vector<2x4xf32>
    %563 = vector.extract_strided_slice %448 {offsets = [0, 1], sizes = [2, 1], strides = [1, 1]} : vector<2x4xf32> to vector<2x1xf32>
    %564 = vector.extract_strided_slice %7 {offsets = [1, 0], sizes = [1, 4], strides = [1, 1]} : vector<4x4xf32> to vector<1x4xf32>
    %565 = vector.broadcast %563 : vector<2x1xf32> to vector<2x4xf32>
    %566 = vector.broadcast %564 : vector<1x4xf32> to vector<2x4xf32>
    %567 = arith.mulf %565, %566 : vector<2x4xf32>
    %568 = arith.addf %562, %567 : vector<2x4xf32>
    %569 = vector.extract_strided_slice %448 {offsets = [0, 2], sizes = [2, 1], strides = [1, 1]} : vector<2x4xf32> to vector<2x1xf32>
    %570 = vector.extract_strided_slice %7 {offsets = [2, 0], sizes = [1, 4], strides = [1, 1]} : vector<4x4xf32> to vector<1x4xf32>
    %571 = vector.broadcast %569 : vector<2x1xf32> to vector<2x4xf32>
    %572 = vector.broadcast %570 : vector<1x4xf32> to vector<2x4xf32>
    %573 = arith.mulf %571, %572 : vector<2x4xf32>
    %574 = arith.addf %568, %573 : vector<2x4xf32>
    %575 = vector.extract_strided_slice %448 {offsets = [0, 3], sizes = [2, 1], strides = [1, 1]} : vector<2x4xf32> to vector<2x1xf32>
    %576 = vector.extract_strided_slice %7 {offsets = [3, 0], sizes = [1, 4], strides = [1, 1]} : vector<4x4xf32> to vector<1x4xf32>
    %577 = vector.broadcast %575 : vector<2x1xf32> to vector<2x4xf32>
    %578 = vector.broadcast %576 : vector<1x4xf32> to vector<2x4xf32>
    %579 = arith.mulf %577, %578 : vector<2x4xf32>
    %580 = arith.addf %574, %579 : vector<2x4xf32>
    %581 = vector.broadcast %11 : vector<1x4xf32> to vector<2x4xf32>
    %582 = arith.addf %580, %581 : vector<2x4xf32>
    %583 = vector.extract_strided_slice %498 {offsets = [0, 0], sizes = [2, 1], strides = [1, 1]} : vector<2x4xf32> to vector<2x1xf32>
    %584 = vector.extract_strided_slice %9 {offsets = [0, 0], sizes = [1, 4], strides = [1, 1]} : vector<4x4xf32> to vector<1x4xf32>
    %585 = vector.broadcast %583 : vector<2x1xf32> to vector<2x4xf32>
    %586 = vector.broadcast %584 : vector<1x4xf32> to vector<2x4xf32>
    %587 = arith.mulf %585, %586 : vector<2x4xf32>
    %588 = vector.extract_strided_slice %498 {offsets = [0, 1], sizes = [2, 1], strides = [1, 1]} : vector<2x4xf32> to vector<2x1xf32>
    %589 = vector.extract_strided_slice %9 {offsets = [1, 0], sizes = [1, 4], strides = [1, 1]} : vector<4x4xf32> to vector<1x4xf32>
    %590 = vector.broadcast %588 : vector<2x1xf32> to vector<2x4xf32>
    %591 = vector.broadcast %589 : vector<1x4xf32> to vector<2x4xf32>
    %592 = arith.mulf %590, %591 : vector<2x4xf32>
    %593 = arith.addf %587, %592 : vector<2x4xf32>
    %594 = vector.extract_strided_slice %498 {offsets = [0, 2], sizes = [2, 1], strides = [1, 1]} : vector<2x4xf32> to vector<2x1xf32>
    %595 = vector.extract_strided_slice %9 {offsets = [2, 0], sizes = [1, 4], strides = [1, 1]} : vector<4x4xf32> to vector<1x4xf32>
    %596 = vector.broadcast %594 : vector<2x1xf32> to vector<2x4xf32>
    %597 = vector.broadcast %595 : vector<1x4xf32> to vector<2x4xf32>
    %598 = arith.mulf %596, %597 : vector<2x4xf32>
    %599 = arith.addf %593, %598 : vector<2x4xf32>
    %600 = vector.extract_strided_slice %498 {offsets = [0, 3], sizes = [2, 1], strides = [1, 1]} : vector<2x4xf32> to vector<2x1xf32>
    %601 = vector.extract_strided_slice %9 {offsets = [3, 0], sizes = [1, 4], strides = [1, 1]} : vector<4x4xf32> to vector<1x4xf32>
    %602 = vector.broadcast %600 : vector<2x1xf32> to vector<2x4xf32>
    %603 = vector.broadcast %601 : vector<1x4xf32> to vector<2x4xf32>
    %604 = arith.mulf %602, %603 : vector<2x4xf32>
    %605 = arith.addf %599, %604 : vector<2x4xf32>
    %606 = arith.addf %582, %605 : vector<2x4xf32>
    %607 = math.tanh %606 : vector<2x4xf32>
    %608 = vector.broadcast %12 : vector<1x4xf32> to vector<2x4xf32>
    %609 = arith.mulf %607, %608 : vector<2x4xf32>
    %cst_50 = arith.constant dense<0.000000e+00> : vector<2xf32>
    %610 = vector.multi_reduction <add>, %609, %cst_50 [1] : vector<2x4xf32> to vector<2xf32>
    %611 = vector.shape_cast %610 : vector<2xf32> to vector<2x1xf32>
    %612 = vector.broadcast %13 : f32 to vector<2x1xf32>
    %613 = arith.addf %611, %612 : vector<2x1xf32>
    %c0_51 = arith.constant 0 : index
    %c4_52 = arith.constant 4 : index
    %614 = vector.load %arg7[%c0_51, %c4_52] : memref<2x10xf32, #tpu.memory_space<vmem>>, vector<2x1xf32>
    tpu.vector_store %arg7[%c0_51, %c4_52], %613 {strides = array<i32>} : memref<2x10xf32, #tpu.memory_space<vmem>>, vector<2x1xf32>,
    %c6 = arith.constant 6 : index
    %c0_53 = arith.constant 0 : index
    %c0_54 = arith.constant 0 : index
    %615 = vector.load %arg0[%c6, %c0_53, %c0_54] : memref<10x2x4xf32, #tpu.memory_space<vmem>>, vector<1x2x4xf32>
    %616 = vector.shape_cast %615 : vector<1x2x4xf32> to vector<2x4xf32>
    %617 = vector.extract_strided_slice %616 {offsets = [0, 0], sizes = [2, 1], strides = [1, 1]} : vector<2x4xf32> to vector<2x1xf32>
    %618 = vector.extract_strided_slice %1 {offsets = [0, 0], sizes = [1, 4], strides = [1, 1]} : vector<4x4xf32> to vector<1x4xf32>
    %619 = vector.broadcast %617 : vector<2x1xf32> to vector<2x4xf32>
    %620 = vector.broadcast %618 : vector<1x4xf32> to vector<2x4xf32>
    %621 = arith.mulf %619, %620 : vector<2x4xf32>
    %622 = vector.extract_strided_slice %616 {offsets = [0, 1], sizes = [2, 1], strides = [1, 1]} : vector<2x4xf32> to vector<2x1xf32>
    %623 = vector.extract_strided_slice %1 {offsets = [1, 0], sizes = [1, 4], strides = [1, 1]} : vector<4x4xf32> to vector<1x4xf32>
    %624 = vector.broadcast %622 : vector<2x1xf32> to vector<2x4xf32>
    %625 = vector.broadcast %623 : vector<1x4xf32> to vector<2x4xf32>
    %626 = arith.mulf %624, %625 : vector<2x4xf32>
    %627 = arith.addf %621, %626 : vector<2x4xf32>
    %628 = vector.extract_strided_slice %616 {offsets = [0, 2], sizes = [2, 1], strides = [1, 1]} : vector<2x4xf32> to vector<2x1xf32>
    %629 = vector.extract_strided_slice %1 {offsets = [2, 0], sizes = [1, 4], strides = [1, 1]} : vector<4x4xf32> to vector<1x4xf32>
    %630 = vector.broadcast %628 : vector<2x1xf32> to vector<2x4xf32>
    %631 = vector.broadcast %629 : vector<1x4xf32> to vector<2x4xf32>
    %632 = arith.mulf %630, %631 : vector<2x4xf32>
    %633 = arith.addf %627, %632 : vector<2x4xf32>
    %634 = vector.extract_strided_slice %616 {offsets = [0, 3], sizes = [2, 1], strides = [1, 1]} : vector<2x4xf32> to vector<2x1xf32>
    %635 = vector.extract_strided_slice %1 {offsets = [3, 0], sizes = [1, 4], strides = [1, 1]} : vector<4x4xf32> to vector<1x4xf32>
    %636 = vector.broadcast %634 : vector<2x1xf32> to vector<2x4xf32>
    %637 = vector.broadcast %635 : vector<1x4xf32> to vector<2x4xf32>
    %638 = arith.mulf %636, %637 : vector<2x4xf32>
    %639 = arith.addf %633, %638 : vector<2x4xf32>
    %640 = vector.broadcast %5 : vector<1x4xf32> to vector<2x4xf32>
    %641 = arith.addf %639, %640 : vector<2x4xf32>
    %642 = vector.extract_strided_slice %557 {offsets = [0, 0], sizes = [2, 1], strides = [1, 1]} : vector<2x4xf32> to vector<2x1xf32>
    %643 = vector.extract_strided_slice %3 {offsets = [0, 0], sizes = [1, 4], strides = [1, 1]} : vector<4x4xf32> to vector<1x4xf32>
    %644 = vector.broadcast %642 : vector<2x1xf32> to vector<2x4xf32>
    %645 = vector.broadcast %643 : vector<1x4xf32> to vector<2x4xf32>
    %646 = arith.mulf %644, %645 : vector<2x4xf32>
    %647 = vector.extract_strided_slice %557 {offsets = [0, 1], sizes = [2, 1], strides = [1, 1]} : vector<2x4xf32> to vector<2x1xf32>
    %648 = vector.extract_strided_slice %3 {offsets = [1, 0], sizes = [1, 4], strides = [1, 1]} : vector<4x4xf32> to vector<1x4xf32>
    %649 = vector.broadcast %647 : vector<2x1xf32> to vector<2x4xf32>
    %650 = vector.broadcast %648 : vector<1x4xf32> to vector<2x4xf32>
    %651 = arith.mulf %649, %650 : vector<2x4xf32>
    %652 = arith.addf %646, %651 : vector<2x4xf32>
    %653 = vector.extract_strided_slice %557 {offsets = [0, 2], sizes = [2, 1], strides = [1, 1]} : vector<2x4xf32> to vector<2x1xf32>
    %654 = vector.extract_strided_slice %3 {offsets = [2, 0], sizes = [1, 4], strides = [1, 1]} : vector<4x4xf32> to vector<1x4xf32>
    %655 = vector.broadcast %653 : vector<2x1xf32> to vector<2x4xf32>
    %656 = vector.broadcast %654 : vector<1x4xf32> to vector<2x4xf32>
    %657 = arith.mulf %655, %656 : vector<2x4xf32>
    %658 = arith.addf %652, %657 : vector<2x4xf32>
    %659 = vector.extract_strided_slice %557 {offsets = [0, 3], sizes = [2, 1], strides = [1, 1]} : vector<2x4xf32> to vector<2x1xf32>
    %660 = vector.extract_strided_slice %3 {offsets = [3, 0], sizes = [1, 4], strides = [1, 1]} : vector<4x4xf32> to vector<1x4xf32>
    %661 = vector.broadcast %659 : vector<2x1xf32> to vector<2x4xf32>
    %662 = vector.broadcast %660 : vector<1x4xf32> to vector<2x4xf32>
    %663 = arith.mulf %661, %662 : vector<2x4xf32>
    %664 = arith.addf %658, %663 : vector<2x4xf32>
    %665 = arith.addf %641, %664 : vector<2x4xf32>
    %666 = math.tanh %665 : vector<2x4xf32>
    %667 = vector.extract_strided_slice %557 {offsets = [0, 0], sizes = [2, 1], strides = [1, 1]} : vector<2x4xf32> to vector<2x1xf32>
    %668 = vector.extract_strided_slice %7 {offsets = [0, 0], sizes = [1, 4], strides = [1, 1]} : vector<4x4xf32> to vector<1x4xf32>
    %669 = vector.broadcast %667 : vector<2x1xf32> to vector<2x4xf32>
    %670 = vector.broadcast %668 : vector<1x4xf32> to vector<2x4xf32>
    %671 = arith.mulf %669, %670 : vector<2x4xf32>
    %672 = vector.extract_strided_slice %557 {offsets = [0, 1], sizes = [2, 1], strides = [1, 1]} : vector<2x4xf32> to vector<2x1xf32>
    %673 = vector.extract_strided_slice %7 {offsets = [1, 0], sizes = [1, 4], strides = [1, 1]} : vector<4x4xf32> to vector<1x4xf32>
    %674 = vector.broadcast %672 : vector<2x1xf32> to vector<2x4xf32>
    %675 = vector.broadcast %673 : vector<1x4xf32> to vector<2x4xf32>
    %676 = arith.mulf %674, %675 : vector<2x4xf32>
    %677 = arith.addf %671, %676 : vector<2x4xf32>
    %678 = vector.extract_strided_slice %557 {offsets = [0, 2], sizes = [2, 1], strides = [1, 1]} : vector<2x4xf32> to vector<2x1xf32>
    %679 = vector.extract_strided_slice %7 {offsets = [2, 0], sizes = [1, 4], strides = [1, 1]} : vector<4x4xf32> to vector<1x4xf32>
    %680 = vector.broadcast %678 : vector<2x1xf32> to vector<2x4xf32>
    %681 = vector.broadcast %679 : vector<1x4xf32> to vector<2x4xf32>
    %682 = arith.mulf %680, %681 : vector<2x4xf32>
    %683 = arith.addf %677, %682 : vector<2x4xf32>
    %684 = vector.extract_strided_slice %557 {offsets = [0, 3], sizes = [2, 1], strides = [1, 1]} : vector<2x4xf32> to vector<2x1xf32>
    %685 = vector.extract_strided_slice %7 {offsets = [3, 0], sizes = [1, 4], strides = [1, 1]} : vector<4x4xf32> to vector<1x4xf32>
    %686 = vector.broadcast %684 : vector<2x1xf32> to vector<2x4xf32>
    %687 = vector.broadcast %685 : vector<1x4xf32> to vector<2x4xf32>
    %688 = arith.mulf %686, %687 : vector<2x4xf32>
    %689 = arith.addf %683, %688 : vector<2x4xf32>
    %690 = vector.broadcast %11 : vector<1x4xf32> to vector<2x4xf32>
    %691 = arith.addf %689, %690 : vector<2x4xf32>
    %692 = vector.extract_strided_slice %607 {offsets = [0, 0], sizes = [2, 1], strides = [1, 1]} : vector<2x4xf32> to vector<2x1xf32>
    %693 = vector.extract_strided_slice %9 {offsets = [0, 0], sizes = [1, 4], strides = [1, 1]} : vector<4x4xf32> to vector<1x4xf32>
    %694 = vector.broadcast %692 : vector<2x1xf32> to vector<2x4xf32>
    %695 = vector.broadcast %693 : vector<1x4xf32> to vector<2x4xf32>
    %696 = arith.mulf %694, %695 : vector<2x4xf32>
    %697 = vector.extract_strided_slice %607 {offsets = [0, 1], sizes = [2, 1], strides = [1, 1]} : vector<2x4xf32> to vector<2x1xf32>
    %698 = vector.extract_strided_slice %9 {offsets = [1, 0], sizes = [1, 4], strides = [1, 1]} : vector<4x4xf32> to vector<1x4xf32>
    %699 = vector.broadcast %697 : vector<2x1xf32> to vector<2x4xf32>
    %700 = vector.broadcast %698 : vector<1x4xf32> to vector<2x4xf32>
    %701 = arith.mulf %699, %700 : vector<2x4xf32>
    %702 = arith.addf %696, %701 : vector<2x4xf32>
    %703 = vector.extract_strided_slice %607 {offsets = [0, 2], sizes = [2, 1], strides = [1, 1]} : vector<2x4xf32> to vector<2x1xf32>
    %704 = vector.extract_strided_slice %9 {offsets = [2, 0], sizes = [1, 4], strides = [1, 1]} : vector<4x4xf32> to vector<1x4xf32>
    %705 = vector.broadcast %703 : vector<2x1xf32> to vector<2x4xf32>
    %706 = vector.broadcast %704 : vector<1x4xf32> to vector<2x4xf32>
    %707 = arith.mulf %705, %706 : vector<2x4xf32>
    %708 = arith.addf %702, %707 : vector<2x4xf32>
    %709 = vector.extract_strided_slice %607 {offsets = [0, 3], sizes = [2, 1], strides = [1, 1]} : vector<2x4xf32> to vector<2x1xf32>
    %710 = vector.extract_strided_slice %9 {offsets = [3, 0], sizes = [1, 4], strides = [1, 1]} : vector<4x4xf32> to vector<1x4xf32>
    %711 = vector.broadcast %709 : vector<2x1xf32> to vector<2x4xf32>
    %712 = vector.broadcast %710 : vector<1x4xf32> to vector<2x4xf32>
    %713 = arith.mulf %711, %712 : vector<2x4xf32>
    %714 = arith.addf %708, %713 : vector<2x4xf32>
    %715 = arith.addf %691, %714 : vector<2x4xf32>
    %716 = math.tanh %715 : vector<2x4xf32>
    %717 = vector.broadcast %12 : vector<1x4xf32> to vector<2x4xf32>
    %718 = arith.mulf %716, %717 : vector<2x4xf32>
    %cst_55 = arith.constant dense<0.000000e+00> : vector<2xf32>
    %719 = vector.multi_reduction <add>, %718, %cst_55 [1] : vector<2x4xf32> to vector<2xf32>
    %720 = vector.shape_cast %719 : vector<2xf32> to vector<2x1xf32>
    %721 = vector.broadcast %13 : f32 to vector<2x1xf32>
    %722 = arith.addf %720, %721 : vector<2x1xf32>
    %c0_56 = arith.constant 0 : index
    %c5_57 = arith.constant 5 : index
    %723 = vector.load %arg7[%c0_56, %c5_57] : memref<2x10xf32, #tpu.memory_space<vmem>>, vector<2x1xf32>
    tpu.vector_store %arg7[%c0_56, %c5_57], %722 {strides = array<i32>} : memref<2x10xf32, #tpu.memory_space<vmem>>, vector<2x1xf32>,
    %c7 = arith.constant 7 : index
    %c0_58 = arith.constant 0 : index
    %c0_59 = arith.constant 0 : index
    %724 = vector.load %arg0[%c7, %c0_58, %c0_59] : memref<10x2x4xf32, #tpu.memory_space<vmem>>, vector<1x2x4xf32>
    %725 = vector.shape_cast %724 : vector<1x2x4xf32> to vector<2x4xf32>
    %726 = vector.extract_strided_slice %725 {offsets = [0, 0], sizes = [2, 1], strides = [1, 1]} : vector<2x4xf32> to vector<2x1xf32>
    %727 = vector.extract_strided_slice %1 {offsets = [0, 0], sizes = [1, 4], strides = [1, 1]} : vector<4x4xf32> to vector<1x4xf32>
    %728 = vector.broadcast %726 : vector<2x1xf32> to vector<2x4xf32>
    %729 = vector.broadcast %727 : vector<1x4xf32> to vector<2x4xf32>
    %730 = arith.mulf %728, %729 : vector<2x4xf32>
    %731 = vector.extract_strided_slice %725 {offsets = [0, 1], sizes = [2, 1], strides = [1, 1]} : vector<2x4xf32> to vector<2x1xf32>
    %732 = vector.extract_strided_slice %1 {offsets = [1, 0], sizes = [1, 4], strides = [1, 1]} : vector<4x4xf32> to vector<1x4xf32>
    %733 = vector.broadcast %731 : vector<2x1xf32> to vector<2x4xf32>
    %734 = vector.broadcast %732 : vector<1x4xf32> to vector<2x4xf32>
    %735 = arith.mulf %733, %734 : vector<2x4xf32>
    %736 = arith.addf %730, %735 : vector<2x4xf32>
    %737 = vector.extract_strided_slice %725 {offsets = [0, 2], sizes = [2, 1], strides = [1, 1]} : vector<2x4xf32> to vector<2x1xf32>
    %738 = vector.extract_strided_slice %1 {offsets = [2, 0], sizes = [1, 4], strides = [1, 1]} : vector<4x4xf32> to vector<1x4xf32>
    %739 = vector.broadcast %737 : vector<2x1xf32> to vector<2x4xf32>
    %740 = vector.broadcast %738 : vector<1x4xf32> to vector<2x4xf32>
    %741 = arith.mulf %739, %740 : vector<2x4xf32>
    %742 = arith.addf %736, %741 : vector<2x4xf32>
    %743 = vector.extract_strided_slice %725 {offsets = [0, 3], sizes = [2, 1], strides = [1, 1]} : vector<2x4xf32> to vector<2x1xf32>
    %744 = vector.extract_strided_slice %1 {offsets = [3, 0], sizes = [1, 4], strides = [1, 1]} : vector<4x4xf32> to vector<1x4xf32>
    %745 = vector.broadcast %743 : vector<2x1xf32> to vector<2x4xf32>
    %746 = vector.broadcast %744 : vector<1x4xf32> to vector<2x4xf32>
    %747 = arith.mulf %745, %746 : vector<2x4xf32>
    %748 = arith.addf %742, %747 : vector<2x4xf32>
    %749 = vector.broadcast %5 : vector<1x4xf32> to vector<2x4xf32>
    %750 = arith.addf %748, %749 : vector<2x4xf32>
    %751 = vector.extract_strided_slice %666 {offsets = [0, 0], sizes = [2, 1], strides = [1, 1]} : vector<2x4xf32> to vector<2x1xf32>
    %752 = vector.extract_strided_slice %3 {offsets = [0, 0], sizes = [1, 4], strides = [1, 1]} : vector<4x4xf32> to vector<1x4xf32>
    %753 = vector.broadcast %751 : vector<2x1xf32> to vector<2x4xf32>
    %754 = vector.broadcast %752 : vector<1x4xf32> to vector<2x4xf32>
    %755 = arith.mulf %753, %754 : vector<2x4xf32>
    %756 = vector.extract_strided_slice %666 {offsets = [0, 1], sizes = [2, 1], strides = [1, 1]} : vector<2x4xf32> to vector<2x1xf32>
    %757 = vector.extract_strided_slice %3 {offsets = [1, 0], sizes = [1, 4], strides = [1, 1]} : vector<4x4xf32> to vector<1x4xf32>
    %758 = vector.broadcast %756 : vector<2x1xf32> to vector<2x4xf32>
    %759 = vector.broadcast %757 : vector<1x4xf32> to vector<2x4xf32>
    %760 = arith.mulf %758, %759 : vector<2x4xf32>
    %761 = arith.addf %755, %760 : vector<2x4xf32>
    %762 = vector.extract_strided_slice %666 {offsets = [0, 2], sizes = [2, 1], strides = [1, 1]} : vector<2x4xf32> to vector<2x1xf32>
    %763 = vector.extract_strided_slice %3 {offsets = [2, 0], sizes = [1, 4], strides = [1, 1]} : vector<4x4xf32> to vector<1x4xf32>
    %764 = vector.broadcast %762 : vector<2x1xf32> to vector<2x4xf32>
    %765 = vector.broadcast %763 : vector<1x4xf32> to vector<2x4xf32>
    %766 = arith.mulf %764, %765 : vector<2x4xf32>
    %767 = arith.addf %761, %766 : vector<2x4xf32>
    %768 = vector.extract_strided_slice %666 {offsets = [0, 3], sizes = [2, 1], strides = [1, 1]} : vector<2x4xf32> to vector<2x1xf32>
    %769 = vector.extract_strided_slice %3 {offsets = [3, 0], sizes = [1, 4], strides = [1, 1]} : vector<4x4xf32> to vector<1x4xf32>
    %770 = vector.broadcast %768 : vector<2x1xf32> to vector<2x4xf32>
    %771 = vector.broadcast %769 : vector<1x4xf32> to vector<2x4xf32>
    %772 = arith.mulf %770, %771 : vector<2x4xf32>
    %773 = arith.addf %767, %772 : vector<2x4xf32>
    %774 = arith.addf %750, %773 : vector<2x4xf32>
    %775 = math.tanh %774 : vector<2x4xf32>
    %776 = vector.extract_strided_slice %666 {offsets = [0, 0], sizes = [2, 1], strides = [1, 1]} : vector<2x4xf32> to vector<2x1xf32>
    %777 = vector.extract_strided_slice %7 {offsets = [0, 0], sizes = [1, 4], strides = [1, 1]} : vector<4x4xf32> to vector<1x4xf32>
    %778 = vector.broadcast %776 : vector<2x1xf32> to vector<2x4xf32>
    %779 = vector.broadcast %777 : vector<1x4xf32> to vector<2x4xf32>
    %780 = arith.mulf %778, %779 : vector<2x4xf32>
    %781 = vector.extract_strided_slice %666 {offsets = [0, 1], sizes = [2, 1], strides = [1, 1]} : vector<2x4xf32> to vector<2x1xf32>
    %782 = vector.extract_strided_slice %7 {offsets = [1, 0], sizes = [1, 4], strides = [1, 1]} : vector<4x4xf32> to vector<1x4xf32>
    %783 = vector.broadcast %781 : vector<2x1xf32> to vector<2x4xf32>
    %784 = vector.broadcast %782 : vector<1x4xf32> to vector<2x4xf32>
    %785 = arith.mulf %783, %784 : vector<2x4xf32>
    %786 = arith.addf %780, %785 : vector<2x4xf32>
    %787 = vector.extract_strided_slice %666 {offsets = [0, 2], sizes = [2, 1], strides = [1, 1]} : vector<2x4xf32> to vector<2x1xf32>
    %788 = vector.extract_strided_slice %7 {offsets = [2, 0], sizes = [1, 4], strides = [1, 1]} : vector<4x4xf32> to vector<1x4xf32>
    %789 = vector.broadcast %787 : vector<2x1xf32> to vector<2x4xf32>
    %790 = vector.broadcast %788 : vector<1x4xf32> to vector<2x4xf32>
    %791 = arith.mulf %789, %790 : vector<2x4xf32>
    %792 = arith.addf %786, %791 : vector<2x4xf32>
    %793 = vector.extract_strided_slice %666 {offsets = [0, 3], sizes = [2, 1], strides = [1, 1]} : vector<2x4xf32> to vector<2x1xf32>
    %794 = vector.extract_strided_slice %7 {offsets = [3, 0], sizes = [1, 4], strides = [1, 1]} : vector<4x4xf32> to vector<1x4xf32>
    %795 = vector.broadcast %793 : vector<2x1xf32> to vector<2x4xf32>
    %796 = vector.broadcast %794 : vector<1x4xf32> to vector<2x4xf32>
    %797 = arith.mulf %795, %796 : vector<2x4xf32>
    %798 = arith.addf %792, %797 : vector<2x4xf32>
    %799 = vector.broadcast %11 : vector<1x4xf32> to vector<2x4xf32>
    %800 = arith.addf %798, %799 : vector<2x4xf32>
    %801 = vector.extract_strided_slice %716 {offsets = [0, 0], sizes = [2, 1], strides = [1, 1]} : vector<2x4xf32> to vector<2x1xf32>
    %802 = vector.extract_strided_slice %9 {offsets = [0, 0], sizes = [1, 4], strides = [1, 1]} : vector<4x4xf32> to vector<1x4xf32>
    %803 = vector.broadcast %801 : vector<2x1xf32> to vector<2x4xf32>
    %804 = vector.broadcast %802 : vector<1x4xf32> to vector<2x4xf32>
    %805 = arith.mulf %803, %804 : vector<2x4xf32>
    %806 = vector.extract_strided_slice %716 {offsets = [0, 1], sizes = [2, 1], strides = [1, 1]} : vector<2x4xf32> to vector<2x1xf32>
    %807 = vector.extract_strided_slice %9 {offsets = [1, 0], sizes = [1, 4], strides = [1, 1]} : vector<4x4xf32> to vector<1x4xf32>
    %808 = vector.broadcast %806 : vector<2x1xf32> to vector<2x4xf32>
    %809 = vector.broadcast %807 : vector<1x4xf32> to vector<2x4xf32>
    %810 = arith.mulf %808, %809 : vector<2x4xf32>
    %811 = arith.addf %805, %810 : vector<2x4xf32>
    %812 = vector.extract_strided_slice %716 {offsets = [0, 2], sizes = [2, 1], strides = [1, 1]} : vector<2x4xf32> to vector<2x1xf32>
    %813 = vector.extract_strided_slice %9 {offsets = [2, 0], sizes = [1, 4], strides = [1, 1]} : vector<4x4xf32> to vector<1x4xf32>
    %814 = vector.broadcast %812 : vector<2x1xf32> to vector<2x4xf32>
    %815 = vector.broadcast %813 : vector<1x4xf32> to vector<2x4xf32>
    %816 = arith.mulf %814, %815 : vector<2x4xf32>
    %817 = arith.addf %811, %816 : vector<2x4xf32>
    %818 = vector.extract_strided_slice %716 {offsets = [0, 3], sizes = [2, 1], strides = [1, 1]} : vector<2x4xf32> to vector<2x1xf32>
    %819 = vector.extract_strided_slice %9 {offsets = [3, 0], sizes = [1, 4], strides = [1, 1]} : vector<4x4xf32> to vector<1x4xf32>
    %820 = vector.broadcast %818 : vector<2x1xf32> to vector<2x4xf32>
    %821 = vector.broadcast %819 : vector<1x4xf32> to vector<2x4xf32>
    %822 = arith.mulf %820, %821 : vector<2x4xf32>
    %823 = arith.addf %817, %822 : vector<2x4xf32>
    %824 = arith.addf %800, %823 : vector<2x4xf32>
    %825 = math.tanh %824 : vector<2x4xf32>
    %826 = vector.broadcast %12 : vector<1x4xf32> to vector<2x4xf32>
    %827 = arith.mulf %825, %826 : vector<2x4xf32>
    %cst_60 = arith.constant dense<0.000000e+00> : vector<2xf32>
    %828 = vector.multi_reduction <add>, %827, %cst_60 [1] : vector<2x4xf32> to vector<2xf32>
    %829 = vector.shape_cast %828 : vector<2xf32> to vector<2x1xf32>
    %830 = vector.broadcast %13 : f32 to vector<2x1xf32>
    %831 = arith.addf %829, %830 : vector<2x1xf32>
    %c0_61 = arith.constant 0 : index
    %c6_62 = arith.constant 6 : index
    %832 = vector.load %arg7[%c0_61, %c6_62] : memref<2x10xf32, #tpu.memory_space<vmem>>, vector<2x1xf32>
    tpu.vector_store %arg7[%c0_61, %c6_62], %831 {strides = array<i32>} : memref<2x10xf32, #tpu.memory_space<vmem>>, vector<2x1xf32>,
    %c8 = arith.constant 8 : index
    %c0_63 = arith.constant 0 : index
    %c0_64 = arith.constant 0 : index
    %833 = vector.load %arg0[%c8, %c0_63, %c0_64] : memref<10x2x4xf32, #tpu.memory_space<vmem>>, vector<1x2x4xf32>
    %834 = vector.shape_cast %833 : vector<1x2x4xf32> to vector<2x4xf32>
    %835 = vector.extract_strided_slice %834 {offsets = [0, 0], sizes = [2, 1], strides = [1, 1]} : vector<2x4xf32> to vector<2x1xf32>
    %836 = vector.extract_strided_slice %1 {offsets = [0, 0], sizes = [1, 4], strides = [1, 1]} : vector<4x4xf32> to vector<1x4xf32>
    %837 = vector.broadcast %835 : vector<2x1xf32> to vector<2x4xf32>
    %838 = vector.broadcast %836 : vector<1x4xf32> to vector<2x4xf32>
    %839 = arith.mulf %837, %838 : vector<2x4xf32>
    %840 = vector.extract_strided_slice %834 {offsets = [0, 1], sizes = [2, 1], strides = [1, 1]} : vector<2x4xf32> to vector<2x1xf32>
    %841 = vector.extract_strided_slice %1 {offsets = [1, 0], sizes = [1, 4], strides = [1, 1]} : vector<4x4xf32> to vector<1x4xf32>
    %842 = vector.broadcast %840 : vector<2x1xf32> to vector<2x4xf32>
    %843 = vector.broadcast %841 : vector<1x4xf32> to vector<2x4xf32>
    %844 = arith.mulf %842, %843 : vector<2x4xf32>
    %845 = arith.addf %839, %844 : vector<2x4xf32>
    %846 = vector.extract_strided_slice %834 {offsets = [0, 2], sizes = [2, 1], strides = [1, 1]} : vector<2x4xf32> to vector<2x1xf32>
    %847 = vector.extract_strided_slice %1 {offsets = [2, 0], sizes = [1, 4], strides = [1, 1]} : vector<4x4xf32> to vector<1x4xf32>
    %848 = vector.broadcast %846 : vector<2x1xf32> to vector<2x4xf32>
    %849 = vector.broadcast %847 : vector<1x4xf32> to vector<2x4xf32>
    %850 = arith.mulf %848, %849 : vector<2x4xf32>
    %851 = arith.addf %845, %850 : vector<2x4xf32>
    %852 = vector.extract_strided_slice %834 {offsets = [0, 3], sizes = [2, 1], strides = [1, 1]} : vector<2x4xf32> to vector<2x1xf32>
    %853 = vector.extract_strided_slice %1 {offsets = [3, 0], sizes = [1, 4], strides = [1, 1]} : vector<4x4xf32> to vector<1x4xf32>
    %854 = vector.broadcast %852 : vector<2x1xf32> to vector<2x4xf32>
    %855 = vector.broadcast %853 : vector<1x4xf32> to vector<2x4xf32>
    %856 = arith.mulf %854, %855 : vector<2x4xf32>
    %857 = arith.addf %851, %856 : vector<2x4xf32>
    %858 = vector.broadcast %5 : vector<1x4xf32> to vector<2x4xf32>
    %859 = arith.addf %857, %858 : vector<2x4xf32>
    %860 = vector.extract_strided_slice %775 {offsets = [0, 0], sizes = [2, 1], strides = [1, 1]} : vector<2x4xf32> to vector<2x1xf32>
    %861 = vector.extract_strided_slice %3 {offsets = [0, 0], sizes = [1, 4], strides = [1, 1]} : vector<4x4xf32> to vector<1x4xf32>
    %862 = vector.broadcast %860 : vector<2x1xf32> to vector<2x4xf32>
    %863 = vector.broadcast %861 : vector<1x4xf32> to vector<2x4xf32>
    %864 = arith.mulf %862, %863 : vector<2x4xf32>
    %865 = vector.extract_strided_slice %775 {offsets = [0, 1], sizes = [2, 1], strides = [1, 1]} : vector<2x4xf32> to vector<2x1xf32>
    %866 = vector.extract_strided_slice %3 {offsets = [1, 0], sizes = [1, 4], strides = [1, 1]} : vector<4x4xf32> to vector<1x4xf32>
    %867 = vector.broadcast %865 : vector<2x1xf32> to vector<2x4xf32>
    %868 = vector.broadcast %866 : vector<1x4xf32> to vector<2x4xf32>
    %869 = arith.mulf %867, %868 : vector<2x4xf32>
    %870 = arith.addf %864, %869 : vector<2x4xf32>
    %871 = vector.extract_strided_slice %775 {offsets = [0, 2], sizes = [2, 1], strides = [1, 1]} : vector<2x4xf32> to vector<2x1xf32>
    %872 = vector.extract_strided_slice %3 {offsets = [2, 0], sizes = [1, 4], strides = [1, 1]} : vector<4x4xf32> to vector<1x4xf32>
    %873 = vector.broadcast %871 : vector<2x1xf32> to vector<2x4xf32>
    %874 = vector.broadcast %872 : vector<1x4xf32> to vector<2x4xf32>
    %875 = arith.mulf %873, %874 : vector<2x4xf32>
    %876 = arith.addf %870, %875 : vector<2x4xf32>
    %877 = vector.extract_strided_slice %775 {offsets = [0, 3], sizes = [2, 1], strides = [1, 1]} : vector<2x4xf32> to vector<2x1xf32>
    %878 = vector.extract_strided_slice %3 {offsets = [3, 0], sizes = [1, 4], strides = [1, 1]} : vector<4x4xf32> to vector<1x4xf32>
    %879 = vector.broadcast %877 : vector<2x1xf32> to vector<2x4xf32>
    %880 = vector.broadcast %878 : vector<1x4xf32> to vector<2x4xf32>
    %881 = arith.mulf %879, %880 : vector<2x4xf32>
    %882 = arith.addf %876, %881 : vector<2x4xf32>
    %883 = arith.addf %859, %882 : vector<2x4xf32>
    %884 = math.tanh %883 : vector<2x4xf32>
    %885 = vector.extract_strided_slice %775 {offsets = [0, 0], sizes = [2, 1], strides = [1, 1]} : vector<2x4xf32> to vector<2x1xf32>
    %886 = vector.extract_strided_slice %7 {offsets = [0, 0], sizes = [1, 4], strides = [1, 1]} : vector<4x4xf32> to vector<1x4xf32>
    %887 = vector.broadcast %885 : vector<2x1xf32> to vector<2x4xf32>
    %888 = vector.broadcast %886 : vector<1x4xf32> to vector<2x4xf32>
    %889 = arith.mulf %887, %888 : vector<2x4xf32>
    %890 = vector.extract_strided_slice %775 {offsets = [0, 1], sizes = [2, 1], strides = [1, 1]} : vector<2x4xf32> to vector<2x1xf32>
    %891 = vector.extract_strided_slice %7 {offsets = [1, 0], sizes = [1, 4], strides = [1, 1]} : vector<4x4xf32> to vector<1x4xf32>
    %892 = vector.broadcast %890 : vector<2x1xf32> to vector<2x4xf32>
    %893 = vector.broadcast %891 : vector<1x4xf32> to vector<2x4xf32>
    %894 = arith.mulf %892, %893 : vector<2x4xf32>
    %895 = arith.addf %889, %894 : vector<2x4xf32>
    %896 = vector.extract_strided_slice %775 {offsets = [0, 2], sizes = [2, 1], strides = [1, 1]} : vector<2x4xf32> to vector<2x1xf32>
    %897 = vector.extract_strided_slice %7 {offsets = [2, 0], sizes = [1, 4], strides = [1, 1]} : vector<4x4xf32> to vector<1x4xf32>
    %898 = vector.broadcast %896 : vector<2x1xf32> to vector<2x4xf32>
    %899 = vector.broadcast %897 : vector<1x4xf32> to vector<2x4xf32>
    %900 = arith.mulf %898, %899 : vector<2x4xf32>
    %901 = arith.addf %895, %900 : vector<2x4xf32>
    %902 = vector.extract_strided_slice %775 {offsets = [0, 3], sizes = [2, 1], strides = [1, 1]} : vector<2x4xf32> to vector<2x1xf32>
    %903 = vector.extract_strided_slice %7 {offsets = [3, 0], sizes = [1, 4], strides = [1, 1]} : vector<4x4xf32> to vector<1x4xf32>
    %904 = vector.broadcast %902 : vector<2x1xf32> to vector<2x4xf32>
    %905 = vector.broadcast %903 : vector<1x4xf32> to vector<2x4xf32>
    %906 = arith.mulf %904, %905 : vector<2x4xf32>
    %907 = arith.addf %901, %906 : vector<2x4xf32>
    %908 = vector.broadcast %11 : vector<1x4xf32> to vector<2x4xf32>
    %909 = arith.addf %907, %908 : vector<2x4xf32>
    %910 = vector.extract_strided_slice %825 {offsets = [0, 0], sizes = [2, 1], strides = [1, 1]} : vector<2x4xf32> to vector<2x1xf32>
    %911 = vector.extract_strided_slice %9 {offsets = [0, 0], sizes = [1, 4], strides = [1, 1]} : vector<4x4xf32> to vector<1x4xf32>
    %912 = vector.broadcast %910 : vector<2x1xf32> to vector<2x4xf32>
    %913 = vector.broadcast %911 : vector<1x4xf32> to vector<2x4xf32>
    %914 = arith.mulf %912, %913 : vector<2x4xf32>
    %915 = vector.extract_strided_slice %825 {offsets = [0, 1], sizes = [2, 1], strides = [1, 1]} : vector<2x4xf32> to vector<2x1xf32>
    %916 = vector.extract_strided_slice %9 {offsets = [1, 0], sizes = [1, 4], strides = [1, 1]} : vector<4x4xf32> to vector<1x4xf32>
    %917 = vector.broadcast %915 : vector<2x1xf32> to vector<2x4xf32>
    %918 = vector.broadcast %916 : vector<1x4xf32> to vector<2x4xf32>
    %919 = arith.mulf %917, %918 : vector<2x4xf32>
    %920 = arith.addf %914, %919 : vector<2x4xf32>
    %921 = vector.extract_strided_slice %825 {offsets = [0, 2], sizes = [2, 1], strides = [1, 1]} : vector<2x4xf32> to vector<2x1xf32>
    %922 = vector.extract_strided_slice %9 {offsets = [2, 0], sizes = [1, 4], strides = [1, 1]} : vector<4x4xf32> to vector<1x4xf32>
    %923 = vector.broadcast %921 : vector<2x1xf32> to vector<2x4xf32>
    %924 = vector.broadcast %922 : vector<1x4xf32> to vector<2x4xf32>
    %925 = arith.mulf %923, %924 : vector<2x4xf32>
    %926 = arith.addf %920, %925 : vector<2x4xf32>
    %927 = vector.extract_strided_slice %825 {offsets = [0, 3], sizes = [2, 1], strides = [1, 1]} : vector<2x4xf32> to vector<2x1xf32>
    %928 = vector.extract_strided_slice %9 {offsets = [3, 0], sizes = [1, 4], strides = [1, 1]} : vector<4x4xf32> to vector<1x4xf32>
    %929 = vector.broadcast %927 : vector<2x1xf32> to vector<2x4xf32>
    %930 = vector.broadcast %928 : vector<1x4xf32> to vector<2x4xf32>
    %931 = arith.mulf %929, %930 : vector<2x4xf32>
    %932 = arith.addf %926, %931 : vector<2x4xf32>
    %933 = arith.addf %909, %932 : vector<2x4xf32>
    %934 = math.tanh %933 : vector<2x4xf32>
    %935 = vector.broadcast %12 : vector<1x4xf32> to vector<2x4xf32>
    %936 = arith.mulf %934, %935 : vector<2x4xf32>
    %cst_65 = arith.constant dense<0.000000e+00> : vector<2xf32>
    %937 = vector.multi_reduction <add>, %936, %cst_65 [1] : vector<2x4xf32> to vector<2xf32>
    %938 = vector.shape_cast %937 : vector<2xf32> to vector<2x1xf32>
    %939 = vector.broadcast %13 : f32 to vector<2x1xf32>
    %940 = arith.addf %938, %939 : vector<2x1xf32>
    %c0_66 = arith.constant 0 : index
    %c7_67 = arith.constant 7 : index
    %941 = vector.load %arg7[%c0_66, %c7_67] : memref<2x10xf32, #tpu.memory_space<vmem>>, vector<2x1xf32>
    tpu.vector_store %arg7[%c0_66, %c7_67], %940 {strides = array<i32>} : memref<2x10xf32, #tpu.memory_space<vmem>>, vector<2x1xf32>,
    %c9 = arith.constant 9 : index
    %c0_68 = arith.constant 0 : index
    %c0_69 = arith.constant 0 : index
    %942 = vector.load %arg0[%c9, %c0_68, %c0_69] : memref<10x2x4xf32, #tpu.memory_space<vmem>>, vector<1x2x4xf32>
    %943 = vector.shape_cast %942 : vector<1x2x4xf32> to vector<2x4xf32>
    %944 = vector.extract_strided_slice %943 {offsets = [0, 0], sizes = [2, 1], strides = [1, 1]} : vector<2x4xf32> to vector<2x1xf32>
    %945 = vector.extract_strided_slice %1 {offsets = [0, 0], sizes = [1, 4], strides = [1, 1]} : vector<4x4xf32> to vector<1x4xf32>
    %946 = vector.broadcast %944 : vector<2x1xf32> to vector<2x4xf32>
    %947 = vector.broadcast %945 : vector<1x4xf32> to vector<2x4xf32>
    %948 = arith.mulf %946, %947 : vector<2x4xf32>
    %949 = vector.extract_strided_slice %943 {offsets = [0, 1], sizes = [2, 1], strides = [1, 1]} : vector<2x4xf32> to vector<2x1xf32>
    %950 = vector.extract_strided_slice %1 {offsets = [1, 0], sizes = [1, 4], strides = [1, 1]} : vector<4x4xf32> to vector<1x4xf32>
    %951 = vector.broadcast %949 : vector<2x1xf32> to vector<2x4xf32>
    %952 = vector.broadcast %950 : vector<1x4xf32> to vector<2x4xf32>
    %953 = arith.mulf %951, %952 : vector<2x4xf32>
    %954 = arith.addf %948, %953 : vector<2x4xf32>
    %955 = vector.extract_strided_slice %943 {offsets = [0, 2], sizes = [2, 1], strides = [1, 1]} : vector<2x4xf32> to vector<2x1xf32>
    %956 = vector.extract_strided_slice %1 {offsets = [2, 0], sizes = [1, 4], strides = [1, 1]} : vector<4x4xf32> to vector<1x4xf32>
    %957 = vector.broadcast %955 : vector<2x1xf32> to vector<2x4xf32>
    %958 = vector.broadcast %956 : vector<1x4xf32> to vector<2x4xf32>
    %959 = arith.mulf %957, %958 : vector<2x4xf32>
    %960 = arith.addf %954, %959 : vector<2x4xf32>
    %961 = vector.extract_strided_slice %943 {offsets = [0, 3], sizes = [2, 1], strides = [1, 1]} : vector<2x4xf32> to vector<2x1xf32>
    %962 = vector.extract_strided_slice %1 {offsets = [3, 0], sizes = [1, 4], strides = [1, 1]} : vector<4x4xf32> to vector<1x4xf32>
    %963 = vector.broadcast %961 : vector<2x1xf32> to vector<2x4xf32>
    %964 = vector.broadcast %962 : vector<1x4xf32> to vector<2x4xf32>
    %965 = arith.mulf %963, %964 : vector<2x4xf32>
    %966 = arith.addf %960, %965 : vector<2x4xf32>
    %967 = vector.broadcast %5 : vector<1x4xf32> to vector<2x4xf32>
    %968 = arith.addf %966, %967 : vector<2x4xf32>
    %969 = vector.extract_strided_slice %884 {offsets = [0, 0], sizes = [2, 1], strides = [1, 1]} : vector<2x4xf32> to vector<2x1xf32>
    %970 = vector.extract_strided_slice %3 {offsets = [0, 0], sizes = [1, 4], strides = [1, 1]} : vector<4x4xf32> to vector<1x4xf32>
    %971 = vector.broadcast %969 : vector<2x1xf32> to vector<2x4xf32>
    %972 = vector.broadcast %970 : vector<1x4xf32> to vector<2x4xf32>
    %973 = arith.mulf %971, %972 : vector<2x4xf32>
    %974 = vector.extract_strided_slice %884 {offsets = [0, 1], sizes = [2, 1], strides = [1, 1]} : vector<2x4xf32> to vector<2x1xf32>
    %975 = vector.extract_strided_slice %3 {offsets = [1, 0], sizes = [1, 4], strides = [1, 1]} : vector<4x4xf32> to vector<1x4xf32>
    %976 = vector.broadcast %974 : vector<2x1xf32> to vector<2x4xf32>
    %977 = vector.broadcast %975 : vector<1x4xf32> to vector<2x4xf32>
    %978 = arith.mulf %976, %977 : vector<2x4xf32>
    %979 = arith.addf %973, %978 : vector<2x4xf32>
    %980 = vector.extract_strided_slice %884 {offsets = [0, 2], sizes = [2, 1], strides = [1, 1]} : vector<2x4xf32> to vector<2x1xf32>
    %981 = vector.extract_strided_slice %3 {offsets = [2, 0], sizes = [1, 4], strides = [1, 1]} : vector<4x4xf32> to vector<1x4xf32>
    %982 = vector.broadcast %980 : vector<2x1xf32> to vector<2x4xf32>
    %983 = vector.broadcast %981 : vector<1x4xf32> to vector<2x4xf32>
    %984 = arith.mulf %982, %983 : vector<2x4xf32>
    %985 = arith.addf %979, %984 : vector<2x4xf32>
    %986 = vector.extract_strided_slice %884 {offsets = [0, 3], sizes = [2, 1], strides = [1, 1]} : vector<2x4xf32> to vector<2x1xf32>
    %987 = vector.extract_strided_slice %3 {offsets = [3, 0], sizes = [1, 4], strides = [1, 1]} : vector<4x4xf32> to vector<1x4xf32>
    %988 = vector.broadcast %986 : vector<2x1xf32> to vector<2x4xf32>
    %989 = vector.broadcast %987 : vector<1x4xf32> to vector<2x4xf32>
    %990 = arith.mulf %988, %989 : vector<2x4xf32>
    %991 = arith.addf %985, %990 : vector<2x4xf32>
    %992 = arith.addf %968, %991 : vector<2x4xf32>
    %993 = math.tanh %992 : vector<2x4xf32>
    %994 = vector.extract_strided_slice %884 {offsets = [0, 0], sizes = [2, 1], strides = [1, 1]} : vector<2x4xf32> to vector<2x1xf32>
    %995 = vector.extract_strided_slice %7 {offsets = [0, 0], sizes = [1, 4], strides = [1, 1]} : vector<4x4xf32> to vector<1x4xf32>
    %996 = vector.broadcast %994 : vector<2x1xf32> to vector<2x4xf32>
    %997 = vector.broadcast %995 : vector<1x4xf32> to vector<2x4xf32>
    %998 = arith.mulf %996, %997 : vector<2x4xf32>
    %999 = vector.extract_strided_slice %884 {offsets = [0, 1], sizes = [2, 1], strides = [1, 1]} : vector<2x4xf32> to vector<2x1xf32>
    %1000 = vector.extract_strided_slice %7 {offsets = [1, 0], sizes = [1, 4], strides = [1, 1]} : vector<4x4xf32> to vector<1x4xf32>
    %1001 = vector.broadcast %999 : vector<2x1xf32> to vector<2x4xf32>
    %1002 = vector.broadcast %1000 : vector<1x4xf32> to vector<2x4xf32>
    %1003 = arith.mulf %1001, %1002 : vector<2x4xf32>
    %1004 = arith.addf %998, %1003 : vector<2x4xf32>
    %1005 = vector.extract_strided_slice %884 {offsets = [0, 2], sizes = [2, 1], strides = [1, 1]} : vector<2x4xf32> to vector<2x1xf32>
    %1006 = vector.extract_strided_slice %7 {offsets = [2, 0], sizes = [1, 4], strides = [1, 1]} : vector<4x4xf32> to vector<1x4xf32>
    %1007 = vector.broadcast %1005 : vector<2x1xf32> to vector<2x4xf32>
    %1008 = vector.broadcast %1006 : vector<1x4xf32> to vector<2x4xf32>
    %1009 = arith.mulf %1007, %1008 : vector<2x4xf32>
    %1010 = arith.addf %1004, %1009 : vector<2x4xf32>
    %1011 = vector.extract_strided_slice %884 {offsets = [0, 3], sizes = [2, 1], strides = [1, 1]} : vector<2x4xf32> to vector<2x1xf32>
    %1012 = vector.extract_strided_slice %7 {offsets = [3, 0], sizes = [1, 4], strides = [1, 1]} : vector<4x4xf32> to vector<1x4xf32>
    %1013 = vector.broadcast %1011 : vector<2x1xf32> to vector<2x4xf32>
    %1014 = vector.broadcast %1012 : vector<1x4xf32> to vector<2x4xf32>
    %1015 = arith.mulf %1013, %1014 : vector<2x4xf32>
    %1016 = arith.addf %1010, %1015 : vector<2x4xf32>
    %1017 = vector.broadcast %11 : vector<1x4xf32> to vector<2x4xf32>
    %1018 = arith.addf %1016, %1017 : vector<2x4xf32>
    %1019 = vector.extract_strided_slice %934 {offsets = [0, 0], sizes = [2, 1], strides = [1, 1]} : vector<2x4xf32> to vector<2x1xf32>
    %1020 = vector.extract_strided_slice %9 {offsets = [0, 0], sizes = [1, 4], strides = [1, 1]} : vector<4x4xf32> to vector<1x4xf32>
    %1021 = vector.broadcast %1019 : vector<2x1xf32> to vector<2x4xf32>
    %1022 = vector.broadcast %1020 : vector<1x4xf32> to vector<2x4xf32>
    %1023 = arith.mulf %1021, %1022 : vector<2x4xf32>
    %1024 = vector.extract_strided_slice %934 {offsets = [0, 1], sizes = [2, 1], strides = [1, 1]} : vector<2x4xf32> to vector<2x1xf32>
    %1025 = vector.extract_strided_slice %9 {offsets = [1, 0], sizes = [1, 4], strides = [1, 1]} : vector<4x4xf32> to vector<1x4xf32>
    %1026 = vector.broadcast %1024 : vector<2x1xf32> to vector<2x4xf32>
    %1027 = vector.broadcast %1025 : vector<1x4xf32> to vector<2x4xf32>
    %1028 = arith.mulf %1026, %1027 : vector<2x4xf32>
    %1029 = arith.addf %1023, %1028 : vector<2x4xf32>
    %1030 = vector.extract_strided_slice %934 {offsets = [0, 2], sizes = [2, 1], strides = [1, 1]} : vector<2x4xf32> to vector<2x1xf32>
    %1031 = vector.extract_strided_slice %9 {offsets = [2, 0], sizes = [1, 4], strides = [1, 1]} : vector<4x4xf32> to vector<1x4xf32>
    %1032 = vector.broadcast %1030 : vector<2x1xf32> to vector<2x4xf32>
    %1033 = vector.broadcast %1031 : vector<1x4xf32> to vector<2x4xf32>
    %1034 = arith.mulf %1032, %1033 : vector<2x4xf32>
    %1035 = arith.addf %1029, %1034 : vector<2x4xf32>
    %1036 = vector.extract_strided_slice %934 {offsets = [0, 3], sizes = [2, 1], strides = [1, 1]} : vector<2x4xf32> to vector<2x1xf32>
    %1037 = vector.extract_strided_slice %9 {offsets = [3, 0], sizes = [1, 4], strides = [1, 1]} : vector<4x4xf32> to vector<1x4xf32>
    %1038 = vector.broadcast %1036 : vector<2x1xf32> to vector<2x4xf32>
    %1039 = vector.broadcast %1037 : vector<1x4xf32> to vector<2x4xf32>
    %1040 = arith.mulf %1038, %1039 : vector<2x4xf32>
    %1041 = arith.addf %1035, %1040 : vector<2x4xf32>
    %1042 = arith.addf %1018, %1041 : vector<2x4xf32>
    %1043 = math.tanh %1042 : vector<2x4xf32>
    %1044 = vector.broadcast %12 : vector<1x4xf32> to vector<2x4xf32>
    %1045 = arith.mulf %1043, %1044 : vector<2x4xf32>
    %cst_70 = arith.constant dense<0.000000e+00> : vector<2xf32>
    %1046 = vector.multi_reduction <add>, %1045, %cst_70 [1] : vector<2x4xf32> to vector<2xf32>
    %1047 = vector.shape_cast %1046 : vector<2xf32> to vector<2x1xf32>
    %1048 = vector.broadcast %13 : f32 to vector<2x1xf32>
    %1049 = arith.addf %1047, %1048 : vector<2x1xf32>
    %c0_71 = arith.constant 0 : index
    %c8_72 = arith.constant 8 : index
    %1050 = vector.load %arg7[%c0_71, %c8_72] : memref<2x10xf32, #tpu.memory_space<vmem>>, vector<2x1xf32>
    tpu.vector_store %arg7[%c0_71, %c8_72], %1049 {strides = array<i32>} : memref<2x10xf32, #tpu.memory_space<vmem>>, vector<2x1xf32>,
    %1051 = vector.extract_strided_slice %993 {offsets = [0, 0], sizes = [2, 1], strides = [1, 1]} : vector<2x4xf32> to vector<2x1xf32>
    %1052 = vector.extract_strided_slice %7 {offsets = [0, 0], sizes = [1, 4], strides = [1, 1]} : vector<4x4xf32> to vector<1x4xf32>
    %1053 = vector.broadcast %1051 : vector<2x1xf32> to vector<2x4xf32>
    %1054 = vector.broadcast %1052 : vector<1x4xf32> to vector<2x4xf32>
    %1055 = arith.mulf %1053, %1054 : vector<2x4xf32>
    %1056 = vector.extract_strided_slice %993 {offsets = [0, 1], sizes = [2, 1], strides = [1, 1]} : vector<2x4xf32> to vector<2x1xf32>
    %1057 = vector.extract_strided_slice %7 {offsets = [1, 0], sizes = [1, 4], strides = [1, 1]} : vector<4x4xf32> to vector<1x4xf32>
    %1058 = vector.broadcast %1056 : vector<2x1xf32> to vector<2x4xf32>
    %1059 = vector.broadcast %1057 : vector<1x4xf32> to vector<2x4xf32>
    %1060 = arith.mulf %1058, %1059 : vector<2x4xf32>
    %1061 = arith.addf %1055, %1060 : vector<2x4xf32>
    %1062 = vector.extract_strided_slice %993 {offsets = [0, 2], sizes = [2, 1], strides = [1, 1]} : vector<2x4xf32> to vector<2x1xf32>
    %1063 = vector.extract_strided_slice %7 {offsets = [2, 0], sizes = [1, 4], strides = [1, 1]} : vector<4x4xf32> to vector<1x4xf32>
    %1064 = vector.broadcast %1062 : vector<2x1xf32> to vector<2x4xf32>
    %1065 = vector.broadcast %1063 : vector<1x4xf32> to vector<2x4xf32>
    %1066 = arith.mulf %1064, %1065 : vector<2x4xf32>
    %1067 = arith.addf %1061, %1066 : vector<2x4xf32>
    %1068 = vector.extract_strided_slice %993 {offsets = [0, 3], sizes = [2, 1], strides = [1, 1]} : vector<2x4xf32> to vector<2x1xf32>
    %1069 = vector.extract_strided_slice %7 {offsets = [3, 0], sizes = [1, 4], strides = [1, 1]} : vector<4x4xf32> to vector<1x4xf32>
    %1070 = vector.broadcast %1068 : vector<2x1xf32> to vector<2x4xf32>
    %1071 = vector.broadcast %1069 : vector<1x4xf32> to vector<2x4xf32>
    %1072 = arith.mulf %1070, %1071 : vector<2x4xf32>
    %1073 = arith.addf %1067, %1072 : vector<2x4xf32>
    %1074 = vector.broadcast %11 : vector<1x4xf32> to vector<2x4xf32>
    %1075 = arith.addf %1073, %1074 : vector<2x4xf32>
    %1076 = vector.extract_strided_slice %1043 {offsets = [0, 0], sizes = [2, 1], strides = [1, 1]} : vector<2x4xf32> to vector<2x1xf32>
    %1077 = vector.extract_strided_slice %9 {offsets = [0, 0], sizes = [1, 4], strides = [1, 1]} : vector<4x4xf32> to vector<1x4xf32>
    %1078 = vector.broadcast %1076 : vector<2x1xf32> to vector<2x4xf32>
    %1079 = vector.broadcast %1077 : vector<1x4xf32> to vector<2x4xf32>
    %1080 = arith.mulf %1078, %1079 : vector<2x4xf32>
    %1081 = vector.extract_strided_slice %1043 {offsets = [0, 1], sizes = [2, 1], strides = [1, 1]} : vector<2x4xf32> to vector<2x1xf32>
    %1082 = vector.extract_strided_slice %9 {offsets = [1, 0], sizes = [1, 4], strides = [1, 1]} : vector<4x4xf32> to vector<1x4xf32>
    %1083 = vector.broadcast %1081 : vector<2x1xf32> to vector<2x4xf32>
    %1084 = vector.broadcast %1082 : vector<1x4xf32> to vector<2x4xf32>
    %1085 = arith.mulf %1083, %1084 : vector<2x4xf32>
    %1086 = arith.addf %1080, %1085 : vector<2x4xf32>
    %1087 = vector.extract_strided_slice %1043 {offsets = [0, 2], sizes = [2, 1], strides = [1, 1]} : vector<2x4xf32> to vector<2x1xf32>
    %1088 = vector.extract_strided_slice %9 {offsets = [2, 0], sizes = [1, 4], strides = [1, 1]} : vector<4x4xf32> to vector<1x4xf32>
    %1089 = vector.broadcast %1087 : vector<2x1xf32> to vector<2x4xf32>
    %1090 = vector.broadcast %1088 : vector<1x4xf32> to vector<2x4xf32>
    %1091 = arith.mulf %1089, %1090 : vector<2x4xf32>
    %1092 = arith.addf %1086, %1091 : vector<2x4xf32>
    %1093 = vector.extract_strided_slice %1043 {offsets = [0, 3], sizes = [2, 1], strides = [1, 1]} : vector<2x4xf32> to vector<2x1xf32>
    %1094 = vector.extract_strided_slice %9 {offsets = [3, 0], sizes = [1, 4], strides = [1, 1]} : vector<4x4xf32> to vector<1x4xf32>
    %1095 = vector.broadcast %1093 : vector<2x1xf32> to vector<2x4xf32>
    %1096 = vector.broadcast %1094 : vector<1x4xf32> to vector<2x4xf32>
    %1097 = arith.mulf %1095, %1096 : vector<2x4xf32>
    %1098 = arith.addf %1092, %1097 : vector<2x4xf32>
    %1099 = arith.addf %1075, %1098 : vector<2x4xf32>
    %1100 = math.tanh %1099 : vector<2x4xf32>
    %1101 = vector.broadcast %12 : vector<1x4xf32> to vector<2x4xf32>
    %1102 = arith.mulf %1100, %1101 : vector<2x4xf32>
    %cst_73 = arith.constant dense<0.000000e+00> : vector<2xf32>
    %1103 = vector.multi_reduction <add>, %1102, %cst_73 [1] : vector<2x4xf32> to vector<2xf32>
    %1104 = vector.shape_cast %1103 : vector<2xf32> to vector<2x1xf32>
    %1105 = vector.broadcast %13 : f32 to vector<2x1xf32>
    %1106 = arith.addf %1104, %1105 : vector<2x1xf32>
    %c0_74 = arith.constant 0 : index
    %c9_75 = arith.constant 9 : index
    %1107 = vector.load %arg7[%c0_74, %c9_75] : memref<2x10xf32, #tpu.memory_space<vmem>>, vector<2x1xf32>
    tpu.vector_store %arg7[%c0_74, %c9_75], %1106 {strides = array<i32>} : memref<2x10xf32, #tpu.memory_space<vmem>>, vector<2x1xf32>,
    %c0_76 = arith.constant 0 : index
    %c0_77 = arith.constant 0 : index
    %c0_78 = arith.constant 0 : index
    %1108 = vector.load %arg8[%c0_76, %c0_77, %c0_78] : memref<2x2x4xf32, #tpu.memory_space<vmem>>, vector<1x2x4xf32>
    %1109 = vector.shape_cast %1108 : vector<1x2x4xf32> to vector<2x4xf32>
    %1110 = vector.shape_cast %993 : vector<2x4xf32> to vector<1x2x4xf32>
    tpu.vector_store %arg8[%c0_76, %c0_77, %c0_78], %1110 {strides = array<i32>} : memref<2x2x4xf32, #tpu.memory_space<vmem>>, vector<1x2x4xf32>,
    %c1_79 = arith.constant 1 : index
    %c0_80 = arith.constant 0 : index
    %c0_81 = arith.constant 0 : index
    %1111 = vector.load %arg8[%c1_79, %c0_80, %c0_81] : memref<2x2x4xf32, #tpu.memory_space<vmem>>, vector<1x2x4xf32>
    %1112 = vector.shape_cast %1111 : vector<1x2x4xf32> to vector<2x4xf32>
    %1113 = vector.shape_cast %1100 : vector<2x4xf32> to vector<1x2x4xf32>
    tpu.vector_store %arg8[%c1_79, %c0_80, %c0_81], %1113 {strides = array<i32>} : memref<2x2x4xf32, #tpu.memory_space<vmem>>, vector<1x2x4xf32>,
    return
  }
}

</mosaic_0001>

<llo_original>
// kernel: rnn_net_forward.1
$region0: #{rnn_net_forward.1}
  #allocation0 [shape = 'u32[]', space=smem, size = 0x4, offset = 0x4, fixed_abs, tag = 'smem constant byte address 0x4 - core index']
  #allocation1 [shape = 'u32[144,128]{1,0:T(1,128)}', space=vmem, size = 0x12000, scoped, tag = 'internal scratch']
  #allocation2 [shape = 'f32[1]{0:T(128)S(6)}', space=smem, size = 0x200, scoped, tag = 'scoped memory for rnn_net_forward.1']
  %s0 = inlined_call_operand.vmem [shape: f32[10,2,4], index: 0, kind: input, shape index: {}]
  %s1 = inlined_call_operand.vmem [shape: f32[2,2,4], index: 1, kind: input, shape index: {}]
  %s2 = inlined_call_operand.vmem [shape: f32[2,4,4], index: 2, kind: input, shape index: {}]
  %s3 = inlined_call_operand.vmem [shape: f32[2,4,4], index: 3, kind: input, shape index: {}]
  %s4 = inlined_call_operand.vmem [shape: f32[2,1,4], index: 4, kind: input, shape index: {}]
  %s5 = inlined_call_operand.vmem [shape: f32[1,4], index: 5, kind: input, shape index: {}]
  %s6 = inlined_call_operand.<no memory space> [shape: f32[1], index: 6, kind: input, shape index: {}]
  %s7 = inlined_call_operand.hbm [shape: f32[2,10], index: 7, kind: output, shape index: {0}]
  %s8 = inlined_call_operand.hbm [shape: f32[2,2,4], index: 8, kind: output, shape index: {1}]
  %9 = xla_tuple %s7, %s8
  %s10 = sld [smem:[#allocation0]]
  $region46: #{rnn_net_forward.1} parent=0
    _
  %s12 = ssub.s32 1, %s10
  %s13 = scalar_select 0, %s12, %s10
  %14 = sst [smem:[#allocation2]] %s6
  $region1: #{rnn_net_forward.1} parent=0
    #allocation3 [shape = 'u8[1024]{0}', space=vmem, size = 0x400, scoped, tag = 'output window, operand 0, single buffered']
    #allocation4 [shape = 's32[1]{0}', space=sflag, size = 0x4, scoped, tag = 'scoped memory for rnn_net_forward.1']
    #allocation5 [shape = 'u8[2048]{0}', space=vmem, size = 0x800, scoped, tag = 'output window, operand 1, single buffered']
    #allocation6 [shape = 's32[1]{0}', space=sflag, size = 0x4, scoped, tag = 'scoped memory for rnn_net_forward.1']
    %15 = vsyncpa [#allocation4], 0
    %16 = vsyncpa [#allocation6], 0
    // Predicated region
    $region2: #{rnn_net_forward.1} parent=1 // pred_check
      _
    $region3: #{rnn_net_forward.1} parent=1 // pred_check_branch
      %18 = sbr.rel (0) target = $region5
    $region4: #{rnn_net_forward.1} parent=1 // pred_region
      _
    $region5: #{rnn_net_forward.1} parent=1 // pred_fallthru
      _
    // Predicated region
    $region6: #{rnn_net_forward.1} parent=1 // pred_check
      _
    $region7: #{rnn_net_forward.1} parent=1 // pred_check_branch
      %20 = sbr.rel (0) target = $region9
    $region8: #{rnn_net_forward.1} parent=1 // pred_region
      _
    $region9: #{rnn_net_forward.1} parent=1 // pred_fallthru
      _
    // Predicated region
    $region10: #{rnn_net_forward.1} parent=1 // pred_check
      _
    $region11: #{rnn_net_forward.1} parent=1 // pred_check_branch
      %22 = sbr.rel (0) target = $region13
    $region12: #{rnn_net_forward.1} parent=1 // pred_region
      _
    $region13: #{rnn_net_forward.1} parent=1 // pred_fallthru
      _
    // Predicated region
    $region14: #{rnn_net_forward.1} parent=1 // pred_check
      _
    $region15: #{rnn_net_forward.1} parent=1 // pred_check_branch
      %24 = sbr.rel (0) target = $region17
    $region16: #{rnn_net_forward.1} parent=1 // pred_region
      _
    $region17: #{rnn_net_forward.1} parent=1 // pred_fallthru
      _
    // Predicated region
    $region18: #{rnn_net_forward.1} parent=1 // pred_check
      _
    $region19: #{rnn_net_forward.1} parent=1 // pred_check_branch
      %26 = sbr.rel (0) target = $region21
    $region20: #{rnn_net_forward.1} parent=1 // pred_region
      _
    $region21: #{rnn_net_forward.1} parent=1 // pred_fallthru
      _
    // Predicated region
    $region22: #{rnn_net_forward.1} parent=1 // pred_check
      _
    $region23: #{rnn_net_forward.1} parent=1 // pred_check_branch
      %28 = sbr.rel (0) target = $region25
    $region24: #{rnn_net_forward.1} parent=1 // pred_region
      _
    $region25: #{rnn_net_forward.1} parent=1 // pred_fallthru
      _
    // Predicated region
    $region26: #{rnn_net_forward.1} parent=1 // pred_check
      _
    $region27: #{rnn_net_forward.1} parent=1 // pred_check_branch
      %30 = sbr.rel (0) target = $region29
    $region28: #{rnn_net_forward.1} parent=1 // pred_region
      _
    $region29: #{rnn_net_forward.1} parent=1 // pred_fallthru
      _
    %v31 = vld [vmem:[%s2] sm:$0xf]
    %v32 = vld [vmem:[%s3] sm:$0xf]
    %v33 = vld [vmem:[%s4] sm:$0x1]
    %s34 = scalar_lea.vmem %s2, 4
    %v35 = vld [vmem:[%s34] sm:$0xf]
    %s36 = scalar_lea.vmem %s3, 4
    %v37 = vld [vmem:[%s36] sm:$0xf]
    %s38 = scalar_lea.vmem %s4, 1
    %v39 = vld [vmem:[%s38] sm:$0x1]
    %v40 = vld [vmem:[%s5] sm:$0x1]
    %s41 = sld [smem:[#allocation2]]
    %v42 = vld [vmem:[%s1] sm:$0x3]
    %s43 = scalar_lea.vmem %s1, 2
    %v44 = vld [vmem:[%s43] sm:$0x3]
    %v45 = vld [vmem:[%s0] sm:$0x3]
    %47 = vset.pattern.permute.xlu0 0
    %48 = vperm.xlu0 %47, %v45
    %v49 = vpop.permute.xlu0 %48
    %v51 = vlaneseq
    %v52 = vshrl.u32 %v51, 7
    %v53 = vsub.s32 0, %v52
    %v54 = vrot.slane %v31, %v53
    %v55 = vmul.f32 %v49, %v54
    %56 = vset.pattern.permute.xlu0 1
    %57 = vperm.xlu0 %56, %v45
    %v58 = vpop.permute.xlu0 %57
    %v60 = vlaneseq
    %v61 = vshrl.u32 %v60, 7
    %v62 = vsub.s32 1, %v61
    %v63 = vrot.slane %v31, %v62
    %v64 = vmul.f32 %v58, %v63
    %v65 = vadd.f32 %v55, %v64
    %66 = vset.pattern.permute.xlu0 2
    %67 = vperm.xlu0 %66, %v45
    %v68 = vpop.permute.xlu0 %67
    %v70 = vlaneseq
    %v71 = vshrl.u32 %v70, 7
    %v72 = vsub.s32 2, %v71
    %v73 = vrot.slane %v31, %v72
    %v74 = vmul.f32 %v68, %v73
    %v75 = vadd.f32 %v65, %v74
    %76 = vset.pattern.permute.xlu0 3
    %77 = vperm.xlu0 %76, %v45
    %v78 = vpop.permute.xlu0 %77
    %v80 = vlaneseq
    %v81 = vshrl.u32 %v80, 7
    %v82 = vsub.s32 3, %v81
    %v83 = vrot.slane %v31, %v82
    %v84 = vmul.f32 %v78, %v83
    %v85 = vadd.f32 %v75, %v84
    %v87 = vlaneseq
    %v88 = vshrl.u32 %v87, 7
    %v89 = vsub.s32 0, %v88
    %v90 = vrot.slane %v33, %v89
    %v92 = vadd.f32 %v85, %v90
    %94 = vset.pattern.permute.xlu0 0
    %95 = vperm.xlu0 %94, %v42
    %v96 = vpop.permute.xlu0 %95
    %v98 = vlaneseq
    %v99 = vshrl.u32 %v98, 7
    %v100 = vsub.s32 0, %v99
    %v101 = vrot.slane %v32, %v100
    %v102 = vmul.f32 %v96, %v101
    %103 = vset.pattern.permute.xlu0 1
    %104 = vperm.xlu0 %103, %v42
    %v105 = vpop.permute.xlu0 %104
    %v107 = vlaneseq
    %v108 = vshrl.u32 %v107, 7
    %v109 = vsub.s32 1, %v108
    %v110 = vrot.slane %v32, %v109
    %v111 = vmul.f32 %v105, %v110
    %v112 = vadd.f32 %v102, %v111
    %113 = vset.pattern.permute.xlu0 2
    %114 = vperm.xlu0 %113, %v42
    %v115 = vpop.permute.xlu0 %114
    %v117 = vlaneseq
    %v118 = vshrl.u32 %v117, 7
    %v119 = vsub.s32 2, %v118
    %v120 = vrot.slane %v32, %v119
    %v121 = vmul.f32 %v115, %v120
    %v122 = vadd.f32 %v112, %v121
    %123 = vset.pattern.permute.xlu0 3
    %124 = vperm.xlu0 %123, %v42
    %v125 = vpop.permute.xlu0 %124
    %v127 = vlaneseq
    %v128 = vshrl.u32 %v127, 7
    %v129 = vsub.s32 3, %v128
    %v130 = vrot.slane %v32, %v129
    %v131 = vmul.f32 %v125, %v130
    %v132 = vadd.f32 %v122, %v131
    %v133 = vadd.f32 %v92, %v132
    %v134 = vtanh.pop %v133
    %s135 = scalar_lea.vmem %s0, 2
    %v136 = vld [vmem:[%s135] sm:$0x3]
    %138 = vset.pattern.permute.xlu0 0
    %139 = vperm.xlu0 %138, %v136
    %v140 = vpop.permute.xlu0 %139
    %v142 = vmul.f32 %v140, %v54
    %143 = vset.pattern.permute.xlu0 1
    %144 = vperm.xlu0 %143, %v136
    %v145 = vpop.permute.xlu0 %144
    %v147 = vmul.f32 %v145, %v63
    %v148 = vadd.f32 %v142, %v147
    %149 = vset.pattern.permute.xlu0 2
    %150 = vperm.xlu0 %149, %v136
    %v151 = vpop.permute.xlu0 %150
    %v153 = vmul.f32 %v151, %v73
    %v154 = vadd.f32 %v148, %v153
    %155 = vset.pattern.permute.xlu0 3
    %156 = vperm.xlu0 %155, %v136
    %v157 = vpop.permute.xlu0 %156
    %v159 = vmul.f32 %v157, %v83
    %v160 = vadd.f32 %v154, %v159
    %v161 = vadd.f32 %v160, %v90
    %163 = vset.pattern.permute.xlu0 0
    %164 = vperm.xlu0 %163, %v134
    %v165 = vpop.permute.xlu0 %164
    %v167 = vmul.f32 %v165, %v101
    %168 = vset.pattern.permute.xlu0 1
    %169 = vperm.xlu0 %168, %v134
    %v170 = vpop.permute.xlu0 %169
    %v172 = vmul.f32 %v170, %v110
    %v173 = vadd.f32 %v167, %v172
    %174 = vset.pattern.permute.xlu0 2
    %175 = vperm.xlu0 %174, %v134
    %v176 = vpop.permute.xlu0 %175
    %v178 = vmul.f32 %v176, %v120
    %v179 = vadd.f32 %v173, %v178
    %180 = vset.pattern.permute.xlu0 3
    %181 = vperm.xlu0 %180, %v134
    %v182 = vpop.permute.xlu0 %181
    %v184 = vmul.f32 %v182, %v130
    %v185 = vadd.f32 %v179, %v184
    %v186 = vadd.f32 %v161, %v185
    %v187 = vtanh.pop %v186
    %v188 = vlaneseq
    %v189 = vshrl.u32 %v188, 7
    %v190 = vsub.s32 0, %v189
    %v191 = vrot.slane %v35, %v190
    %v192 = vmul.f32 %v165, %v191
    %v193 = vlaneseq
    %v194 = vshrl.u32 %v193, 7
    %v195 = vsub.s32 1, %v194
    %v196 = vrot.slane %v35, %v195
    %v197 = vmul.f32 %v170, %v196
    %v198 = vadd.f32 %v192, %v197
    %v199 = vlaneseq
    %v200 = vshrl.u32 %v199, 7
    %v201 = vsub.s32 2, %v200
    %v202 = vrot.slane %v35, %v201
    %v203 = vmul.f32 %v176, %v202
    %v204 = vadd.f32 %v198, %v203
    %v205 = vlaneseq
    %v206 = vshrl.u32 %v205, 7
    %v207 = vsub.s32 3, %v206
    %v208 = vrot.slane %v35, %v207
    %v209 = vmul.f32 %v182, %v208
    %v210 = vadd.f32 %v204, %v209
    %v212 = vlaneseq
    %v213 = vshrl.u32 %v212, 7
    %v214 = vsub.s32 0, %v213
    %v215 = vrot.slane %v39, %v214
    %v217 = vadd.f32 %v210, %v215
    %219 = vset.pattern.permute.xlu0 0
    %220 = vperm.xlu0 %219, %v44
    %v221 = vpop.permute.xlu0 %220
    %v223 = vlaneseq
    %v224 = vshrl.u32 %v223, 7
    %v225 = vsub.s32 0, %v224
    %v226 = vrot.slane %v37, %v225
    %v227 = vmul.f32 %v221, %v226
    %228 = vset.pattern.permute.xlu0 1
    %229 = vperm.xlu0 %228, %v44
    %v230 = vpop.permute.xlu0 %229
    %v232 = vlaneseq
    %v233 = vshrl.u32 %v232, 7
    %v234 = vsub.s32 1, %v233
    %v235 = vrot.slane %v37, %v234
    %v236 = vmul.f32 %v230, %v235
    %v237 = vadd.f32 %v227, %v236
    %238 = vset.pattern.permute.xlu0 2
    %239 = vperm.xlu0 %238, %v44
    %v240 = vpop.permute.xlu0 %239
    %v242 = vlaneseq
    %v243 = vshrl.u32 %v242, 7
    %v244 = vsub.s32 2, %v243
    %v245 = vrot.slane %v37, %v244
    %v246 = vmul.f32 %v240, %v245
    %v247 = vadd.f32 %v237, %v246
    %248 = vset.pattern.permute.xlu0 3
    %249 = vperm.xlu0 %248, %v44
    %v250 = vpop.permute.xlu0 %249
    %v252 = vlaneseq
    %v253 = vshrl.u32 %v252, 7
    %v254 = vsub.s32 3, %v253
    %v255 = vrot.slane %v37, %v254
    %v256 = vmul.f32 %v250, %v255
    %v257 = vadd.f32 %v247, %v256
    %v258 = vadd.f32 %v217, %v257
    %v259 = vtanh.pop %v258
    %v261 = vlaneseq
    %v262 = vshrl.u32 %v261, 7
    %v263 = vsub.s32 0, %v262
    %v264 = vrot.slane %v40, %v263
    %v266 = vmul.f32 %v259, %v264
    %vm267 = vcmask 25600
    %v268 = vsel %vm267, %v266, 0.0
    %269 = vadd.xlane.f32.xlu0 %v268
    %v270 = vpop.xlane.xlu0 %269
    %v271 = vstv %s41
    %v272 = vadd.f32 %v270, %v271
    %vm273 = vcmask 1024
    %274 = vst.msk [vmem:[#allocation3] sm:$0x3] %vm273, %v272
    %s275 = scalar_lea.vmem %s0, 4
    %v276 = vld [vmem:[%s275] sm:$0x3]
    %278 = vset.pattern.permute.xlu0 0
    %279 = vperm.xlu0 %278, %v276
    %v280 = vpop.permute.xlu0 %279
    %v282 = vmul.f32 %v280, %v54
    %283 = vset.pattern.permute.xlu0 1
    %284 = vperm.xlu0 %283, %v276
    %v285 = vpop.permute.xlu0 %284
    %v287 = vmul.f32 %v285, %v63
    %v288 = vadd.f32 %v282, %v287
    %289 = vset.pattern.permute.xlu0 2
    %290 = vperm.xlu0 %289, %v276
    %v291 = vpop.permute.xlu0 %290
    %v293 = vmul.f32 %v291, %v73
    %v294 = vadd.f32 %v288, %v293
    %295 = vset.pattern.permute.xlu0 3
    %296 = vperm.xlu0 %295, %v276
    %v297 = vpop.permute.xlu0 %296
    %v299 = vmul.f32 %v297, %v83
    %v300 = vadd.f32 %v294, %v299
    %v301 = vadd.f32 %v300, %v90
    %303 = vset.pattern.permute.xlu0 0
    %304 = vperm.xlu0 %303, %v187
    %v305 = vpop.permute.xlu0 %304
    %v307 = vmul.f32 %v305, %v101
    %308 = vset.pattern.permute.xlu0 1
    %309 = vperm.xlu0 %308, %v187
    %v310 = vpop.permute.xlu0 %309
    %v312 = vmul.f32 %v310, %v110
    %v313 = vadd.f32 %v307, %v312
    %314 = vset.pattern.permute.xlu0 2
    %315 = vperm.xlu0 %314, %v187
    %v316 = vpop.permute.xlu0 %315
    %v318 = vmul.f32 %v316, %v120
    %v319 = vadd.f32 %v313, %v318
    %320 = vset.pattern.permute.xlu0 3
    %321 = vperm.xlu0 %320, %v187
    %v322 = vpop.permute.xlu0 %321
    %v324 = vmul.f32 %v322, %v130
    %v325 = vadd.f32 %v319, %v324
    %v326 = vadd.f32 %v301, %v325
    %v327 = vtanh.pop %v326
    %v328 = vmul.f32 %v305, %v191
    %v329 = vmul.f32 %v310, %v196
    %v330 = vadd.f32 %v328, %v329
    %v331 = vmul.f32 %v316, %v202
    %v332 = vadd.f32 %v330, %v331
    %v333 = vmul.f32 %v322, %v208
    %v334 = vadd.f32 %v332, %v333
    %v335 = vadd.f32 %v334, %v215
    %337 = vset.pattern.permute.xlu0 0
    %338 = vperm.xlu0 %337, %v259
    %v339 = vpop.permute.xlu0 %338
    %v341 = vmul.f32 %v339, %v226
    %342 = vset.pattern.permute.xlu0 1
    %343 = vperm.xlu0 %342, %v259
    %v344 = vpop.permute.xlu0 %343
    %v346 = vmul.f32 %v344, %v235
    %v347 = vadd.f32 %v341, %v346
    %348 = vset.pattern.permute.xlu0 2
    %349 = vperm.xlu0 %348, %v259
    %v350 = vpop.permute.xlu0 %349
    %v352 = vmul.f32 %v350, %v245
    %v353 = vadd.f32 %v347, %v352
    %354 = vset.pattern.permute.xlu0 3
    %355 = vperm.xlu0 %354, %v259
    %v356 = vpop.permute.xlu0 %355
    %v358 = vmul.f32 %v356, %v255
    %v359 = vadd.f32 %v353, %v358
    %v360 = vadd.f32 %v335, %v359
    %v361 = vtanh.pop %v360
    %v362 = vmul.f32 %v361, %v264
    %v363 = vsel %vm267, %v362, 0.0
    %364 = vadd.xlane.f32.xlu0 %v363
    %v365 = vpop.xlane.xlu0 %364
    %v366 = vadd.f32 %v365, %v271
    %vm367 = vcmask 9224
    %368 = vst.msk [vmem:[#allocation3] sm:$0x3] %vm367, %v366
    %s369 = scalar_lea.vmem %s0, 6
    %v370 = vld [vmem:[%s369] sm:$0x3]
    %372 = vset.pattern.permute.xlu0 0
    %373 = vperm.xlu0 %372, %v370
    %v374 = vpop.permute.xlu0 %373
    %v376 = vmul.f32 %v374, %v54
    %377 = vset.pattern.permute.xlu0 1
    %378 = vperm.xlu0 %377, %v370
    %v379 = vpop.permute.xlu0 %378
    %v381 = vmul.f32 %v379, %v63
    %v382 = vadd.f32 %v376, %v381
    %383 = vset.pattern.permute.xlu0 2
    %384 = vperm.xlu0 %383, %v370
    %v385 = vpop.permute.xlu0 %384
    %v387 = vmul.f32 %v385, %v73
    %v388 = vadd.f32 %v382, %v387
    %389 = vset.pattern.permute.xlu0 3
    %390 = vperm.xlu0 %389, %v370
    %v391 = vpop.permute.xlu0 %390
    %v393 = vmul.f32 %v391, %v83
    %v394 = vadd.f32 %v388, %v393
    %v395 = vadd.f32 %v394, %v90
    %397 = vset.pattern.permute.xlu0 0
    %398 = vperm.xlu0 %397, %v327
    %v399 = vpop.permute.xlu0 %398
    %v401 = vmul.f32 %v399, %v101
    %402 = vset.pattern.permute.xlu0 1
    %403 = vperm.xlu0 %402, %v327
    %v404 = vpop.permute.xlu0 %403
    %v406 = vmul.f32 %v404, %v110
    %v407 = vadd.f32 %v401, %v406
    %408 = vset.pattern.permute.xlu0 2
    %409 = vperm.xlu0 %408, %v327
    %v410 = vpop.permute.xlu0 %409
    %v412 = vmul.f32 %v410, %v120
    %v413 = vadd.f32 %v407, %v412
    %414 = vset.pattern.permute.xlu0 3
    %415 = vperm.xlu0 %414, %v327
    %v416 = vpop.permute.xlu0 %415
    %v418 = vmul.f32 %v416, %v130
    %v419 = vadd.f32 %v413, %v418
    %v420 = vadd.f32 %v395, %v419
    %v421 = vtanh.pop %v420
    %v422 = vmul.f32 %v399, %v191
    %v423 = vmul.f32 %v404, %v196
    %v424 = vadd.f32 %v422, %v423
    %v425 = vmul.f32 %v410, %v202
    %v426 = vadd.f32 %v424, %v425
    %v427 = vmul.f32 %v416, %v208
    %v428 = vadd.f32 %v426, %v427
    %v429 = vadd.f32 %v428, %v215
    %431 = vset.pattern.permute.xlu0 0
    %432 = vperm.xlu0 %431, %v361
    %v433 = vpop.permute.xlu0 %432
    %v435 = vmul.f32 %v433, %v226
    %436 = vset.pattern.permute.xlu0 1
    %437 = vperm.xlu0 %436, %v361
    %v438 = vpop.permute.xlu0 %437
    %v440 = vmul.f32 %v438, %v235
    %v441 = vadd.f32 %v435, %v440
    %442 = vset.pattern.permute.xlu0 2
    %443 = vperm.xlu0 %442, %v361
    %v444 = vpop.permute.xlu0 %443
    %v446 = vmul.f32 %v444, %v245
    %v447 = vadd.f32 %v441, %v446
    %448 = vset.pattern.permute.xlu0 3
    %449 = vperm.xlu0 %448, %v361
    %v450 = vpop.permute.xlu0 %449
    %v452 = vmul.f32 %v450, %v255
    %v453 = vadd.f32 %v447, %v452
    %v454 = vadd.f32 %v429, %v453
    %v455 = vtanh.pop %v454
    %v456 = vmul.f32 %v455, %v264
    %v457 = vsel %vm267, %v456, 0.0
    %458 = vadd.xlane.f32.xlu0 %v457
    %v459 = vpop.xlane.xlu0 %458
    %v460 = vadd.f32 %v459, %v271
    %vm461 = vcmask 17424
    %462 = vst.msk [vmem:[#allocation3] sm:$0x3] %vm461, %v460
    %s463 = scalar_lea.vmem %s0, 8
    %v464 = vld [vmem:[%s463] sm:$0x3]
    %466 = vset.pattern.permute.xlu0 0
    %467 = vperm.xlu0 %466, %v464
    %v468 = vpop.permute.xlu0 %467
    %v470 = vmul.f32 %v468, %v54
    %471 = vset.pattern.permute.xlu0 1
    %472 = vperm.xlu0 %471, %v464
    %v473 = vpop.permute.xlu0 %472
    %v475 = vmul.f32 %v473, %v63
    %v476 = vadd.f32 %v470, %v475
    %477 = vset.pattern.permute.xlu0 2
    %478 = vperm.xlu0 %477, %v464
    %v479 = vpop.permute.xlu0 %478
    %v481 = vmul.f32 %v479, %v73
    %v482 = vadd.f32 %v476, %v481
    %483 = vset.pattern.permute.xlu0 3
    %484 = vperm.xlu0 %483, %v464
    %v485 = vpop.permute.xlu0 %484
    %v487 = vmul.f32 %v485, %v83
    %v488 = vadd.f32 %v482, %v487
    %v489 = vadd.f32 %v488, %v90
    %491 = vset.pattern.permute.xlu0 0
    %492 = vperm.xlu0 %491, %v421
    %v493 = vpop.permute.xlu0 %492
    %v495 = vmul.f32 %v493, %v101
    %496 = vset.pattern.permute.xlu0 1
    %497 = vperm.xlu0 %496, %v421
    %v498 = vpop.permute.xlu0 %497
    %v500 = vmul.f32 %v498, %v110
    %v501 = vadd.f32 %v495, %v500
    %502 = vset.pattern.permute.xlu0 2
    %503 = vperm.xlu0 %502, %v421
    %v504 = vpop.permute.xlu0 %503
    %v506 = vmul.f32 %v504, %v120
    %v507 = vadd.f32 %v501, %v506
    %508 = vset.pattern.permute.xlu0 3
    %509 = vperm.xlu0 %508, %v421
    %v510 = vpop.permute.xlu0 %509
    %v512 = vmul.f32 %v510, %v130
    %v513 = vadd.f32 %v507, %v512
    %v514 = vadd.f32 %v489, %v513
    %v515 = vtanh.pop %v514
    %v516 = vmul.f32 %v493, %v191
    %v517 = vmul.f32 %v498, %v196
    %v518 = vadd.f32 %v516, %v517
    %v519 = vmul.f32 %v504, %v202
    %v520 = vadd.f32 %v518, %v519
    %v521 = vmul.f32 %v510, %v208
    %v522 = vadd.f32 %v520, %v521
    %v523 = vadd.f32 %v522, %v215
    %525 = vset.pattern.permute.xlu0 0
    %526 = vperm.xlu0 %525, %v455
    %v527 = vpop.permute.xlu0 %526
    %v529 = vmul.f32 %v527, %v226
    %530 = vset.pattern.permute.xlu0 1
    %531 = vperm.xlu0 %530, %v455
    %v532 = vpop.permute.xlu0 %531
    %v534 = vmul.f32 %v532, %v235
    %v535 = vadd.f32 %v529, %v534
    %536 = vset.pattern.permute.xlu0 2
    %537 = vperm.xlu0 %536, %v455
    %v538 = vpop.permute.xlu0 %537
    %v540 = vmul.f32 %v538, %v245
    %v541 = vadd.f32 %v535, %v540
    %542 = vset.pattern.permute.xlu0 3
    %543 = vperm.xlu0 %542, %v455
    %v544 = vpop.permute.xlu0 %543
    %v546 = vmul.f32 %v544, %v255
    %v547 = vadd.f32 %v541, %v546
    %v548 = vadd.f32 %v523, %v547
    %v549 = vtanh.pop %v548
    %v550 = vmul.f32 %v549, %v264
    %v551 = vsel %vm267, %v550, 0.0
    %552 = vadd.xlane.f32.xlu0 %v551
    %v553 = vpop.xlane.xlu0 %552
    %v554 = vadd.f32 %v553, %v271
    %vm555 = vcmask 25624
    %556 = vst.msk [vmem:[#allocation3] sm:$0x3] %vm555, %v554
    %s557 = scalar_lea.vmem %s0, 10
    %v558 = vld [vmem:[%s557] sm:$0x3]
    %560 = vset.pattern.permute.xlu0 0
    %561 = vperm.xlu0 %560, %v558
    %v562 = vpop.permute.xlu0 %561
    %v564 = vmul.f32 %v562, %v54
    %565 = vset.pattern.permute.xlu0 1
    %566 = vperm.xlu0 %565, %v558
    %v567 = vpop.permute.xlu0 %566
    %v569 = vmul.f32 %v567, %v63
    %v570 = vadd.f32 %v564, %v569
    %571 = vset.pattern.permute.xlu0 2
    %572 = vperm.xlu0 %571, %v558
    %v573 = vpop.permute.xlu0 %572
    %v575 = vmul.f32 %v573, %v73
    %v576 = vadd.f32 %v570, %v575
    %577 = vset.pattern.permute.xlu0 3
    %578 = vperm.xlu0 %577, %v558
    %v579 = vpop.permute.xlu0 %578
    %v581 = vmul.f32 %v579, %v83
    %v582 = vadd.f32 %v576, %v581
    %v583 = vadd.f32 %v582, %v90
    %585 = vset.pattern.permute.xlu0 0
    %586 = vperm.xlu0 %585, %v515
    %v587 = vpop.permute.xlu0 %586
    %v589 = vmul.f32 %v587, %v101
    %590 = vset.pattern.permute.xlu0 1
    %591 = vperm.xlu0 %590, %v515
    %v592 = vpop.permute.xlu0 %591
    %v594 = vmul.f32 %v592, %v110
    %v595 = vadd.f32 %v589, %v594
    %596 = vset.pattern.permute.xlu0 2
    %597 = vperm.xlu0 %596, %v515
    %v598 = vpop.permute.xlu0 %597
    %v600 = vmul.f32 %v598, %v120
    %v601 = vadd.f32 %v595, %v600
    %602 = vset.pattern.permute.xlu0 3
    %603 = vperm.xlu0 %602, %v515
    %v604 = vpop.permute.xlu0 %603
    %v606 = vmul.f32 %v604, %v130
    %v607 = vadd.f32 %v601, %v606
    %v608 = vadd.f32 %v583, %v607
    %v609 = vtanh.pop %v608
    %v610 = vmul.f32 %v587, %v191
    %v611 = vmul.f32 %v592, %v196
    %v612 = vadd.f32 %v610, %v611
    %v613 = vmul.f32 %v598, %v202
    %v614 = vadd.f32 %v612, %v613
    %v615 = vmul.f32 %v604, %v208
    %v616 = vadd.f32 %v614, %v615
    %v617 = vadd.f32 %v616, %v215
    %619 = vset.pattern.permute.xlu0 0
    %620 = vperm.xlu0 %619, %v549
    %v621 = vpop.permute.xlu0 %620
    %v623 = vmul.f32 %v621, %v226
    %624 = vset.pattern.permute.xlu0 1
    %625 = vperm.xlu0 %624, %v549
    %v626 = vpop.permute.xlu0 %625
    %v628 = vmul.f32 %v626, %v235
    %v629 = vadd.f32 %v623, %v628
    %630 = vset.pattern.permute.xlu0 2
    %631 = vperm.xlu0 %630, %v549
    %v632 = vpop.permute.xlu0 %631
    %v634 = vmul.f32 %v632, %v245
    %v635 = vadd.f32 %v629, %v634
    %636 = vset.pattern.permute.xlu0 3
    %637 = vperm.xlu0 %636, %v549
    %v638 = vpop.permute.xlu0 %637
    %v640 = vmul.f32 %v638, %v255
    %v641 = vadd.f32 %v635, %v640
    %v642 = vadd.f32 %v617, %v641
    %v643 = vtanh.pop %v642
    %v644 = vmul.f32 %v643, %v264
    %v645 = vsel %vm267, %v644, 0.0
    %646 = vadd.xlane.f32.xlu0 %v645
    %v647 = vpop.xlane.xlu0 %646
    %v648 = vadd.f32 %v647, %v271
    %vm649 = vcmask 33824
    %650 = vst.msk [vmem:[#allocation3] sm:$0x3] %vm649, %v648
    %s651 = scalar_lea.vmem %s0, 12
    %v652 = vld [vmem:[%s651] sm:$0x3]
    %654 = vset.pattern.permute.xlu0 0
    %655 = vperm.xlu0 %654, %v652
    %v656 = vpop.permute.xlu0 %655
    %v658 = vmul.f32 %v656, %v54
    %659 = vset.pattern.permute.xlu0 1
    %660 = vperm.xlu0 %659, %v652
    %v661 = vpop.permute.xlu0 %660
    %v663 = vmul.f32 %v661, %v63
    %v664 = vadd.f32 %v658, %v663
    %665 = vset.pattern.permute.xlu0 2
    %666 = vperm.xlu0 %665, %v652
    %v667 = vpop.permute.xlu0 %666
    %v669 = vmul.f32 %v667, %v73
    %v670 = vadd.f32 %v664, %v669
    %671 = vset.pattern.permute.xlu0 3
    %672 = vperm.xlu0 %671, %v652
    %v673 = vpop.permute.xlu0 %672
    %v675 = vmul.f32 %v673, %v83
    %v676 = vadd.f32 %v670, %v675
    %v677 = vadd.f32 %v676, %v90
    %679 = vset.pattern.permute.xlu0 0
    %680 = vperm.xlu0 %679, %v609
    %v681 = vpop.permute.xlu0 %680
    %v683 = vmul.f32 %v681, %v101
    %684 = vset.pattern.permute.xlu0 1
    %685 = vperm.xlu0 %684, %v609
    %v686 = vpop.permute.xlu0 %685
    %v688 = vmul.f32 %v686, %v110
    %v689 = vadd.f32 %v683, %v688
    %690 = vset.pattern.permute.xlu0 2
    %691 = vperm.xlu0 %690, %v609
    %v692 = vpop.permute.xlu0 %691
    %v694 = vmul.f32 %v692, %v120
    %v695 = vadd.f32 %v689, %v694
    %696 = vset.pattern.permute.xlu0 3
    %697 = vperm.xlu0 %696, %v609
    %v698 = vpop.permute.xlu0 %697
    %v700 = vmul.f32 %v698, %v130
    %v701 = vadd.f32 %v695, %v700
    %v702 = vadd.f32 %v677, %v701
    %v703 = vtanh.pop %v702
    %v704 = vmul.f32 %v681, %v191
    %v705 = vmul.f32 %v686, %v196
    %v706 = vadd.f32 %v704, %v705
    %v707 = vmul.f32 %v692, %v202
    %v708 = vadd.f32 %v706, %v707
    %v709 = vmul.f32 %v698, %v208
    %v710 = vadd.f32 %v708, %v709
    %v711 = vadd.f32 %v710, %v215
    %713 = vset.pattern.permute.xlu0 0
    %714 = vperm.xlu0 %713, %v643
    %v715 = vpop.permute.xlu0 %714
    %v717 = vmul.f32 %v715, %v226
    %718 = vset.pattern.permute.xlu0 1
    %719 = vperm.xlu0 %718, %v643
    %v720 = vpop.permute.xlu0 %719
    %v722 = vmul.f32 %v720, %v235
    %v723 = vadd.f32 %v717, %v722
    %724 = vset.pattern.permute.xlu0 2
    %725 = vperm.xlu0 %724, %v643
    %v726 = vpop.permute.xlu0 %725
    %v728 = vmul.f32 %v726, %v245
    %v729 = vadd.f32 %v723, %v728
    %730 = vset.pattern.permute.xlu0 3
    %731 = vperm.xlu0 %730, %v643
    %v732 = vpop.permute.xlu0 %731
    %v734 = vmul.f32 %v732, %v255
    %v735 = vadd.f32 %v729, %v734
    %v736 = vadd.f32 %v711, %v735
    %v737 = vtanh.pop %v736
    %v738 = vmul.f32 %v737, %v264
    %v739 = vsel %vm267, %v738, 0.0
    %740 = vadd.xlane.f32.xlu0 %v739
    %v741 = vpop.xlane.xlu0 %740
    %v742 = vadd.f32 %v741, %v271
    %vm743 = vcmask 42024
    %744 = vst.msk [vmem:[#allocation3] sm:$0x3] %vm743, %v742
    %s745 = scalar_lea.vmem %s0, 14
    %v746 = vld [vmem:[%s745] sm:$0x3]
    %748 = vset.pattern.permute.xlu0 0
    %749 = vperm.xlu0 %748, %v746
    %v750 = vpop.permute.xlu0 %749
    %v752 = vmul.f32 %v750, %v54
    %753 = vset.pattern.permute.xlu0 1
    %754 = vperm.xlu0 %753, %v746
    %v755 = vpop.permute.xlu0 %754
    %v757 = vmul.f32 %v755, %v63
    %v758 = vadd.f32 %v752, %v757
    %759 = vset.pattern.permute.xlu0 2
    %760 = vperm.xlu0 %759, %v746
    %v761 = vpop.permute.xlu0 %760
    %v763 = vmul.f32 %v761, %v73
    %v764 = vadd.f32 %v758, %v763
    %765 = vset.pattern.permute.xlu0 3
    %766 = vperm.xlu0 %765, %v746
    %v767 = vpop.permute.xlu0 %766
    %v769 = vmul.f32 %v767, %v83
    %v770 = vadd.f32 %v764, %v769
    %v771 = vadd.f32 %v770, %v90
    %773 = vset.pattern.permute.xlu0 0
    %774 = vperm.xlu0 %773, %v703
    %v775 = vpop.permute.xlu0 %774
    %v777 = vmul.f32 %v775, %v101
    %778 = vset.pattern.permute.xlu0 1
    %779 = vperm.xlu0 %778, %v703
    %v780 = vpop.permute.xlu0 %779
    %v782 = vmul.f32 %v780, %v110
    %v783 = vadd.f32 %v777, %v782
    %784 = vset.pattern.permute.xlu0 2
    %785 = vperm.xlu0 %784, %v703
    %v786 = vpop.permute.xlu0 %785
    %v788 = vmul.f32 %v786, %v120
    %v789 = vadd.f32 %v783, %v788
    %790 = vset.pattern.permute.xlu0 3
    %791 = vperm.xlu0 %790, %v703
    %v792 = vpop.permute.xlu0 %791
    %v794 = vmul.f32 %v792, %v130
    %v795 = vadd.f32 %v789, %v794
    %v796 = vadd.f32 %v771, %v795
    %v797 = vtanh.pop %v796
    %v798 = vmul.f32 %v775, %v191
    %v799 = vmul.f32 %v780, %v196
    %v800 = vadd.f32 %v798, %v799
    %v801 = vmul.f32 %v786, %v202
    %v802 = vadd.f32 %v800, %v801
    %v803 = vmul.f32 %v792, %v208
    %v804 = vadd.f32 %v802, %v803
    %v805 = vadd.f32 %v804, %v215
    %807 = vset.pattern.permute.xlu0 0
    %808 = vperm.xlu0 %807, %v737
    %v809 = vpop.permute.xlu0 %808
    %v811 = vmul.f32 %v809, %v226
    %812 = vset.pattern.permute.xlu0 1
    %813 = vperm.xlu0 %812, %v737
    %v814 = vpop.permute.xlu0 %813
    %v816 = vmul.f32 %v814, %v235
    %v817 = vadd.f32 %v811, %v816
    %818 = vset.pattern.permute.xlu0 2
    %819 = vperm.xlu0 %818, %v737
    %v820 = vpop.permute.xlu0 %819
    %v822 = vmul.f32 %v820, %v245
    %v823 = vadd.f32 %v817, %v822
    %824 = vset.pattern.permute.xlu0 3
    %825 = vperm.xlu0 %824, %v737
    %v826 = vpop.permute.xlu0 %825
    %v828 = vmul.f32 %v826, %v255
    %v829 = vadd.f32 %v823, %v828
    %v830 = vadd.f32 %v805, %v829
    %v831 = vtanh.pop %v830
    %v832 = vmul.f32 %v831, %v264
    %v833 = vsel %vm267, %v832, 0.0
    %834 = vadd.xlane.f32.xlu0 %v833
    %v835 = vpop.xlane.xlu0 %834
    %v836 = vadd.f32 %v835, %v271
    %vm837 = vcmask 50224
    %838 = vst.msk [vmem:[#allocation3] sm:$0x3] %vm837, %v836
    %s839 = scalar_lea.vmem %s0, 16
    %v840 = vld [vmem:[%s839] sm:$0x3]
    %842 = vset.pattern.permute.xlu0 0
    %843 = vperm.xlu0 %842, %v840
    %v844 = vpop.permute.xlu0 %843
    %v846 = vmul.f32 %v844, %v54
    %847 = vset.pattern.permute.xlu0 1
    %848 = vperm.xlu0 %847, %v840
    %v849 = vpop.permute.xlu0 %848
    %v851 = vmul.f32 %v849, %v63
    %v852 = vadd.f32 %v846, %v851
    %853 = vset.pattern.permute.xlu0 2
    %854 = vperm.xlu0 %853, %v840
    %v855 = vpop.permute.xlu0 %854
    %v857 = vmul.f32 %v855, %v73
    %v858 = vadd.f32 %v852, %v857
    %859 = vset.pattern.permute.xlu0 3
    %860 = vperm.xlu0 %859, %v840
    %v861 = vpop.permute.xlu0 %860
    %v863 = vmul.f32 %v861, %v83
    %v864 = vadd.f32 %v858, %v863
    %v865 = vadd.f32 %v864, %v90
    %867 = vset.pattern.permute.xlu0 0
    %868 = vperm.xlu0 %867, %v797
    %v869 = vpop.permute.xlu0 %868
    %v871 = vmul.f32 %v869, %v101
    %872 = vset.pattern.permute.xlu0 1
    %873 = vperm.xlu0 %872, %v797
    %v874 = vpop.permute.xlu0 %873
    %v876 = vmul.f32 %v874, %v110
    %v877 = vadd.f32 %v871, %v876
    %878 = vset.pattern.permute.xlu0 2
    %879 = vperm.xlu0 %878, %v797
    %v880 = vpop.permute.xlu0 %879
    %v882 = vmul.f32 %v880, %v120
    %v883 = vadd.f32 %v877, %v882
    %884 = vset.pattern.permute.xlu0 3
    %885 = vperm.xlu0 %884, %v797
    %v886 = vpop.permute.xlu0 %885
    %v888 = vmul.f32 %v886, %v130
    %v889 = vadd.f32 %v883, %v888
    %v890 = vadd.f32 %v865, %v889
    %v891 = vtanh.pop %v890
    %v892 = vmul.f32 %v869, %v191
    %v893 = vmul.f32 %v874, %v196
    %v894 = vadd.f32 %v892, %v893
    %v895 = vmul.f32 %v880, %v202
    %v896 = vadd.f32 %v894, %v895
    %v897 = vmul.f32 %v886, %v208
    %v898 = vadd.f32 %v896, %v897
    %v899 = vadd.f32 %v898, %v215
    %901 = vset.pattern.permute.xlu0 0
    %902 = vperm.xlu0 %901, %v831
    %v903 = vpop.permute.xlu0 %902
    %v905 = vmul.f32 %v903, %v226
    %906 = vset.pattern.permute.xlu0 1
    %907 = vperm.xlu0 %906, %v831
    %v908 = vpop.permute.xlu0 %907
    %v910 = vmul.f32 %v908, %v235
    %v911 = vadd.f32 %v905, %v910
    %912 = vset.pattern.permute.xlu0 2
    %913 = vperm.xlu0 %912, %v831
    %v914 = vpop.permute.xlu0 %913
    %v916 = vmul.f32 %v914, %v245
    %v917 = vadd.f32 %v911, %v916
    %918 = vset.pattern.permute.xlu0 3
    %919 = vperm.xlu0 %918, %v831
    %v920 = vpop.permute.xlu0 %919
    %v922 = vmul.f32 %v920, %v255
    %v923 = vadd.f32 %v917, %v922
    %v924 = vadd.f32 %v899, %v923
    %v925 = vtanh.pop %v924
    %v926 = vmul.f32 %v925, %v264
    %v927 = vsel %vm267, %v926, 0.0
    %928 = vadd.xlane.f32.xlu0 %v927
    %v929 = vpop.xlane.xlu0 %928
    %v930 = vadd.f32 %v929, %v271
    %vm931 = vcmask 58424
    %932 = vst.msk [vmem:[#allocation3] sm:$0x3] %vm931, %v930
    %s933 = scalar_lea.vmem %s0, 18
    %v934 = vld [vmem:[%s933] sm:$0x3]
    %936 = vset.pattern.permute.xlu0 0
    %937 = vperm.xlu0 %936, %v934
    %v938 = vpop.permute.xlu0 %937
    %v940 = vmul.f32 %v938, %v54
    %941 = vset.pattern.permute.xlu0 1
    %942 = vperm.xlu0 %941, %v934
    %v943 = vpop.permute.xlu0 %942
    %v945 = vmul.f32 %v943, %v63
    %v946 = vadd.f32 %v940, %v945
    %947 = vset.pattern.permute.xlu0 2
    %948 = vperm.xlu0 %947, %v934
    %v949 = vpop.permute.xlu0 %948
    %v951 = vmul.f32 %v949, %v73
    %v952 = vadd.f32 %v946, %v951
    %953 = vset.pattern.permute.xlu0 3
    %954 = vperm.xlu0 %953, %v934
    %v955 = vpop.permute.xlu0 %954
    %v957 = vmul.f32 %v955, %v83
    %v958 = vadd.f32 %v952, %v957
    %v959 = vadd.f32 %v958, %v90
    %961 = vset.pattern.permute.xlu0 0
    %962 = vperm.xlu0 %961, %v891
    %v963 = vpop.permute.xlu0 %962
    %v965 = vmul.f32 %v963, %v101
    %966 = vset.pattern.permute.xlu0 1
    %967 = vperm.xlu0 %966, %v891
    %v968 = vpop.permute.xlu0 %967
    %v970 = vmul.f32 %v968, %v110
    %v971 = vadd.f32 %v965, %v970
    %972 = vset.pattern.permute.xlu0 2
    %973 = vperm.xlu0 %972, %v891
    %v974 = vpop.permute.xlu0 %973
    %v976 = vmul.f32 %v974, %v120
    %v977 = vadd.f32 %v971, %v976
    %978 = vset.pattern.permute.xlu0 3
    %979 = vperm.xlu0 %978, %v891
    %v980 = vpop.permute.xlu0 %979
    %v982 = vmul.f32 %v980, %v130
    %v983 = vadd.f32 %v977, %v982
    %v984 = vadd.f32 %v959, %v983
    %v985 = vtanh.pop %v984
    %v986 = vmul.f32 %v963, %v191
    %v987 = vmul.f32 %v968, %v196
    %v988 = vadd.f32 %v986, %v987
    %v989 = vmul.f32 %v974, %v202
    %v990 = vadd.f32 %v988, %v989
    %v991 = vmul.f32 %v980, %v208
    %v992 = vadd.f32 %v990, %v991
    %v993 = vadd.f32 %v992, %v215
    %995 = vset.pattern.permute.xlu0 0
    %996 = vperm.xlu0 %995, %v925
    %v997 = vpop.permute.xlu0 %996
    %v999 = vmul.f32 %v997, %v226
    %1000 = vset.pattern.permute.xlu0 1
    %1001 = vperm.xlu0 %1000, %v925
    %v1002 = vpop.permute.xlu0 %1001
    %v1004 = vmul.f32 %v1002, %v235
    %v1005 = vadd.f32 %v999, %v1004
    %1006 = vset.pattern.permute.xlu0 2
    %1007 = vperm.xlu0 %1006, %v925
    %v1008 = vpop.permute.xlu0 %1007
    %v1010 = vmul.f32 %v1008, %v245
    %v1011 = vadd.f32 %v1005, %v1010
    %1012 = vset.pattern.permute.xlu0 3
    %1013 = vperm.xlu0 %1012, %v925
    %v1014 = vpop.permute.xlu0 %1013
    %v1016 = vmul.f32 %v1014, %v255
    %v1017 = vadd.f32 %v1011, %v1016
    %v1018 = vadd.f32 %v993, %v1017
    %v1019 = vtanh.pop %v1018
    %v1020 = vmul.f32 %v1019, %v264
    %v1021 = vsel %vm267, %v1020, 0.0
    %1022 = vadd.xlane.f32.xlu0 %v1021
    %v1023 = vpop.xlane.xlu0 %1022
    %v1024 = vadd.f32 %v1023, %v271
    %vm1025 = vcmask 66624
    %1026 = vst.msk [vmem:[#allocation3] sm:$0x3] %vm1025, %v1024
    %1028 = vset.pattern.permute.xlu0 0
    %1029 = vperm.xlu0 %1028, %v985
    %v1030 = vpop.permute.xlu0 %1029
    %v1032 = vmul.f32 %v1030, %v191
    %1033 = vset.pattern.permute.xlu0 1
    %1034 = vperm.xlu0 %1033, %v985
    %v1035 = vpop.permute.xlu0 %1034
    %v1037 = vmul.f32 %v1035, %v196
    %v1038 = vadd.f32 %v1032, %v1037
    %1039 = vset.pattern.permute.xlu0 2
    %1040 = vperm.xlu0 %1039, %v985
    %v1041 = vpop.permute.xlu0 %1040
    %v1043 = vmul.f32 %v1041, %v202
    %v1044 = vadd.f32 %v1038, %v1043
    %1045 = vset.pattern.permute.xlu0 3
    %1046 = vperm.xlu0 %1045, %v985
    %v1047 = vpop.permute.xlu0 %1046
    %v1049 = vmul.f32 %v1047, %v208
    %v1050 = vadd.f32 %v1044, %v1049
    %v1051 = vadd.f32 %v1050, %v215
    %1053 = vset.pattern.permute.xlu0 0
    %1054 = vperm.xlu0 %1053, %v1019
    %v1055 = vpop.permute.xlu0 %1054
    %v1057 = vmul.f32 %v1055, %v226
    %1058 = vset.pattern.permute.xlu0 1
    %1059 = vperm.xlu0 %1058, %v1019
    %v1060 = vpop.permute.xlu0 %1059
    %v1062 = vmul.f32 %v1060, %v235
    %v1063 = vadd.f32 %v1057, %v1062
    %1064 = vset.pattern.permute.xlu0 2
    %1065 = vperm.xlu0 %1064, %v1019
    %v1066 = vpop.permute.xlu0 %1065
    %v1068 = vmul.f32 %v1066, %v245
    %v1069 = vadd.f32 %v1063, %v1068
    %1070 = vset.pattern.permute.xlu0 3
    %1071 = vperm.xlu0 %1070, %v1019
    %v1072 = vpop.permute.xlu0 %1071
    %v1074 = vmul.f32 %v1072, %v255
    %v1075 = vadd.f32 %v1069, %v1074
    %v1076 = vadd.f32 %v1051, %v1075
    %v1077 = vtanh.pop %v1076
    %v1078 = vmul.f32 %v1077, %v264
    %v1079 = vsel %vm267, %v1078, 0.0
    %1080 = vadd.xlane.f32.xlu0 %v1079
    %v1081 = vpop.xlane.xlu0 %1080
    %v1082 = vadd.f32 %v1081, %v271
    %vm1083 = vcmask 74824
    %1084 = vst.msk [vmem:[#allocation3] sm:$0x3] %vm1083, %v1082
    %1085 = vst.msk [vmem:[#allocation5] sm:$0x3] %vm267, %v985
    %s1086 = scalar_lea.vmem [#allocation5], 2
    %1087 = vst.msk [vmem:[%s1086] sm:$0x3] %vm267, %v1077
    // Predicated region
    $region30: #{rnn_net_forward.1} parent=1 // pred_check
      _
    $region31: #{rnn_net_forward.1} parent=1 // pred_check_branch
      %1089 = sbr.rel (0) target = $region33
    $region32: #{rnn_net_forward.1} parent=1 // pred_region
      %s1091 = ssub.s32 32, 32
      %1092 = vsyncadd [#allocation4], %s1091
      %s1094 = sshll.u32 [#allocation3], 4
      %s1095 = int_to_ptr.vmem [resolvable:$true] %s1094
      %1097 = dma.vmem_to_hbm [thread:$0]  %s1095, 32, %s7, [#allocation4]
    $region33: #{rnn_net_forward.1} parent=1 // pred_fallthru
      _
    // Predicated region
    $region34: #{rnn_net_forward.1} parent=1 // pred_check
      _
    $region35: #{rnn_net_forward.1} parent=1 // pred_check_branch
      %1099 = sbr.rel (0) target = $region37
    $region36: #{rnn_net_forward.1} parent=1 // pred_region
      %s1101 = ssub.s32 64, 64
      %1102 = vsyncadd [#allocation6], %s1101
      %s1103 = sshll.u32 [#allocation5], 4
      %s1104 = int_to_ptr.vmem [resolvable:$true] %s1103
      %1109 = dma.vmem_to_hbm [thread:$0]  %s1104, 64, %s8, [#allocation6], 32, 32, 2
    $region37: #{rnn_net_forward.1} parent=1 // pred_fallthru
      _
    // Predicated region
    $region38: #{rnn_net_forward.1} parent=1 // pred_check
      _
    $region39: #{rnn_net_forward.1} parent=1 // pred_check_branch
      %1111 = sbr.rel (0) target = $region41
    $region40: #{rnn_net_forward.1} parent=1 // pred_region
      %1112 = dma.done [#allocation4], 32
    $region41: #{rnn_net_forward.1} parent=1 // pred_fallthru
      _
    // Predicated region
    $region42: #{rnn_net_forward.1} parent=1 // pred_check
      _
    $region43: #{rnn_net_forward.1} parent=1 // pred_check_branch
      %1114 = sbr.rel (0) target = $region45
    $region44: #{rnn_net_forward.1} parent=1 // pred_region
      %1115 = dma.done [#allocation6], 64
    $region45: #{rnn_net_forward.1} parent=1 // pred_fallthru
      _
    %1116 = vsyncpa [#allocation4], 1
    %1117 = vsyncpa [#allocation6], 1

</llo_original>
